<compile_context>
chip_gen: v6e
topology: v6e:2x2x1
jax: 0.10.0
libtpu: 0.0.40
codegen_flags: <defaults>
</compile_context>

<pallas_src>
import functools

import jax
import jax.numpy as jnp
from jax.experimental import pallas as pl
from jax.experimental.pallas import tpu as pltpu


def _round_up(n, m):
    return ((n + m - 1) // m) * m


def _choose_batch_tile(B, block_batch):
    """Batch tile: multiple of 8 sublanes, capped at block_batch, and sized so
    the grid has >= 2 steps whenever B > 8 (keeps both v7x TensorCores busy)."""
    if B <= 8:
        return B                                   # single tile == full dim
    tm = min(block_batch, _round_up(-(-B // 2), 8))  # ceil(B/2), 8-aligned
    return max(8, tm)


def _mlp_kernel(x_ref,
                w1_ref, b1_ref,
                w2_ref, b2_ref,
                w3_ref, b3_ref,
                w4_ref, b4_ref,
                o_ref):
    # bf16 operands, f32 accumulation; biases stay f32.
    h = jnp.dot(x_ref[...], w1_ref[...], preferred_element_type=jnp.float32)
    h = jnp.maximum(h + b1_ref[...], 0.0).astype(jnp.bfloat16)

    h = jnp.dot(h, w2_ref[...], preferred_element_type=jnp.float32)
    h = jnp.maximum(h + b2_ref[...], 0.0).astype(jnp.bfloat16)

    h = jnp.dot(h, w3_ref[...], preferred_element_type=jnp.float32)
    h = jnp.maximum(h + b3_ref[...], 0.0).astype(jnp.bfloat16)

    out = jnp.dot(h, w4_ref[...], preferred_element_type=jnp.float32)
    out = out + b4_ref[...]

    o_ref[...] = out.astype(o_ref.dtype)


@functools.partial(jax.jit, static_argnames=("block_batch",))
def mlp_forward(x, params, *, block_batch=256):
    """Run the fused 4-layer MLP.

    x:       (B, n_in)  float32
    params:  dict with w1..w4 stored as (in_features, out_features) and
             b1..b4 as (1, out_features), all float32
    returns: (B, n_out) float32
    """
    B, n_in = x.shape
    h1 = params["w1"].shape[1]
    h2 = params["w2"].shape[1]
    h3 = params["w3"].shape[1]
    n_out = params["w4"].shape[1]

    # Zero-pad the layer-1 contraction dim (52 -> 64): aligns x's lane dim and
    # w1's sublane dim; padded rows/cols are zero so the math is unchanged.
    k_pad = _round_up(n_in, 64)
    if k_pad != n_in:
        xp = jnp.pad(x, ((0, 0), (0, k_pad - n_in)))
        w1 = jnp.pad(params["w1"], ((0, k_pad - n_in), (0, 0)))
    else:
        xp, w1 = x, params["w1"]

    # bf16 operands for the MXU (f32 accumulation inside the kernel).
    xp = xp.astype(jnp.bfloat16)
    w1 = w1.astype(jnp.bfloat16)
    w2 = params["w2"].astype(jnp.bfloat16)
    w3 = params["w3"].astype(jnp.bfloat16)
    w4 = params["w4"].astype(jnp.bfloat16)
    b1, b2, b3, b4 = params["b1"], params["b2"], params["b3"], params["b4"]

    tm = _choose_batch_tile(B, block_batch)
    grid = (pl.cdiv(B, tm),)

    # Weights/biases are broadcast (same block every grid step); x / out are
    # tiled along the batch axis only.
    full = lambda i: (0, 0)
    in_specs = [
        pl.BlockSpec((tm, k_pad), lambda i: (i, 0)),
        pl.BlockSpec((k_pad, h1), full), pl.BlockSpec((1, h1), full),
        pl.BlockSpec((h1, h2), full),    pl.BlockSpec((1, h2), full),
        pl.BlockSpec((h2, h3), full),    pl.BlockSpec((1, h3), full),
        pl.BlockSpec((h3, n_out), full), pl.BlockSpec((1, n_out), full),
    ]
    out_spec = pl.BlockSpec((tm, n_out), lambda i: (i, 0))

    flops = 2 * B * (k_pad * h1 + h1 * h2 + h2 * h3 + h3 * n_out)
    bytes_accessed = (
        xp.size * 2                                        # bf16 activations in
        + (w1.size + w2.size + w3.size + w4.size) * 2      # bf16 weights
        + (b1.size + b2.size + b3.size + b4.size) * 4      # f32 biases
        + B * n_out * 4)                                   # f32 output

    return pl.pallas_call(
        _mlp_kernel,
        out_shape=jax.ShapeDtypeStruct((B, n_out), jnp.float32),
        grid_spec=pltpu.PrefetchScalarGridSpec(
            num_scalar_prefetch=0,
            grid=grid,
            in_specs=in_specs,
            out_specs=out_spec,
        ),
        compiler_params=pltpu.CompilerParams(
            dimension_semantics=("parallel",)),
        cost_estimate=pl.CostEstimate(
            flops=flops, transcendentals=0, bytes_accessed=bytes_accessed),
    )(xp, w1, b1, w2, b2, w3, b3, w4, b4)


def init_params(key, n_input, n_output):
    """Deterministic init mirroring nn.Linear's U(-1/sqrt(fan_in), 1/sqrt(fan_in)).

    Weights are stored transposed relative to PyTorch: (in_features, out_features).
    """
    dims = [(n_input, 512), (512, 256), (256, 128), (128, n_output)]
    params = {}
    for idx, (fan_in, fan_out) in enumerate(dims, start=1):
        key, kw, kb = jax.random.split(key, 3)
        bound = 1.0 / jnp.sqrt(jnp.float32(fan_in))
        params[f"w{idx}"] = jax.random.uniform(
            kw, (fan_in, fan_out), jnp.float32, minval=-bound, maxval=bound)
        params[f"b{idx}"] = jax.random.uniform(
            kb, (1, fan_out), jnp.float32, minval=-bound, maxval=bound)
    return params


def mlp_reference(x, params, compute_dtype=jnp.float32):
    """Pure-JAX reference. compute_dtype=bfloat16 mirrors the kernel's
    bf16-operand / f32-accumulation numerics exactly."""
    def dense(h, w, b):
        y = jnp.dot(h.astype(compute_dtype), w.astype(compute_dtype),
                    preferred_element_type=jnp.float32)
        return y + b

    h = jnp.maximum(dense(x, params["w1"], params["b1"]), 0.0)
    h = jnp.maximum(dense(h, params["w2"], params["b2"]), 0.0)
    h = jnp.maximum(dense(h, params["w3"], params["b3"]), 0.0)
    return dense(h, params["w4"], params["b4"])


if __name__ == "__main__":
    # TE (Tennessee Eastman) classifier: 52 process measurements -> 9 classes.
    n_input, n_output = 52, 9

    key = jax.random.PRNGKey(0)
    key, kx_a, kx_b = jax.random.split(key, 3)
    params = init_params(key, n_input, n_output)

    # Two cases: multi-tile grid with a ragged tail (300 = 152 + 148) and a
    # tiny batch with a ragged tail (10 = 8 + 2), per the review's concern.
    for batch, kx in ((300, kx_a), (10, kx_b)):
        x = jax.random.normal(kx, (batch, n_input), jnp.float32)

        out = jax.block_until_ready(mlp_forward(x, params))
        assert out.shape == (batch, n_output)

        ref_bf16 = mlp_reference(x, params, compute_dtype=jnp.bfloat16)
        ref_f32 = mlp_reference(x, params, compute_dtype=jnp.float32)
        assert jnp.allclose(out, ref_bf16, atol=5e-3, rtol=5e-3), (
            f"mismatch vs bf16 reference (batch={batch})")
        assert jnp.allclose(out, ref_f32, atol=5e-2, rtol=5e-2), (
            f"mismatch vs f32 reference (batch={batch})")

    print("KERNEL_OK")
</pallas_src>

<mosaic_0001>
module attributes {stable_mosaic.version = 11 : i64} {
  func.func @_mlp_kernel(%arg0: i32, %arg1: memref<152x64xbf16, #tpu.memory_space<vmem>>, %arg2: memref<64x512xbf16, #tpu.memory_space<vmem>>, %arg3: memref<1x512xf32, #tpu.memory_space<vmem>>, %arg4: memref<512x256xbf16, #tpu.memory_space<vmem>>, %arg5: memref<1x256xf32, #tpu.memory_space<vmem>>, %arg6: memref<256x128xbf16, #tpu.memory_space<vmem>>, %arg7: memref<1x128xf32, #tpu.memory_space<vmem>>, %arg8: memref<128x9xbf16, #tpu.memory_space<vmem>>, %arg9: memref<1x9xf32, #tpu.memory_space<vmem>>, %arg10: memref<152x9xf32, #tpu.memory_space<vmem>>) attributes {dimension_semantics = [#tpu.dimension_semantics<parallel>], iteration_bounds = array<i64: 2>, scalar_prefetch = 0 : i64, scratch_operands = 0 : i64, tpu.core_type = #tpu.core_type<tc>, window_params = [{transform_indices = @transform_0, window_bounds = array<i64: 152, 64>}, {pipeline_mode = #tpu.pipeline_mode<synchronous>, transform_indices = @transform_1, window_bounds = array<i64: 64, 512>}, {pipeline_mode = #tpu.pipeline_mode<synchronous>, transform_indices = @transform_2, window_bounds = array<i64: 1, 512>}, {pipeline_mode = #tpu.pipeline_mode<synchronous>, transform_indices = @transform_3, window_bounds = array<i64: 512, 256>}, {pipeline_mode = #tpu.pipeline_mode<synchronous>, transform_indices = @transform_4, window_bounds = array<i64: 1, 256>}, {pipeline_mode = #tpu.pipeline_mode<synchronous>, transform_indices = @transform_5, window_bounds = array<i64: 256, 128>}, {pipeline_mode = #tpu.pipeline_mode<synchronous>, transform_indices = @transform_6, window_bounds = array<i64: 1, 128>}, {pipeline_mode = #tpu.pipeline_mode<synchronous>, transform_indices = @transform_7, window_bounds = array<i64: 128, 9>}, {pipeline_mode = #tpu.pipeline_mode<synchronous>, transform_indices = @transform_8, window_bounds = array<i64: 1, 9>}, {transform_indices = @transform_9, window_bounds = array<i64: 152, 9>}]} {
    %c0 = arith.constant 0 : index
    %c0_0 = arith.constant 0 : index
    %0 = vector.load %arg1[%c0, %c0_0] : memref<152x64xbf16, #tpu.memory_space<vmem>>, vector<152x64xbf16>
    %c0_1 = arith.constant 0 : index
    %c0_2 = arith.constant 0 : index
    %1 = vector.load %arg2[%c0_1, %c0_2] : memref<64x512xbf16, #tpu.memory_space<vmem>>, vector<64x512xbf16>
    %cst = arith.constant dense<0.000000e+00> : vector<152x512xf32>
    %2 = tpu.matmul %0, %1, %cst {dimension_numbers = #tpu.dot_dimension_numbers<[1], [0], [0], [1], [0, 0, 1, 1], [], []>} : vector<152x64xbf16>, vector<64x512xbf16>, vector<152x512xf32> -> vector<152x512xf32>
    %c0_3 = arith.constant 0 : index
    %c0_4 = arith.constant 0 : index
    %3 = vector.load %arg3[%c0_3, %c0_4] : memref<1x512xf32, #tpu.memory_space<vmem>>, vector<1x512xf32>
    %4 = vector.broadcast %3 : vector<1x512xf32> to vector<152x512xf32>
    %5 = arith.addf %2, %4 : vector<152x512xf32>
    %cst_5 = arith.constant 0.000000e+00 : f32
    %6 = vector.broadcast %cst_5 : f32 to vector<152x512xf32>
    %7 = arith.maximumf %5, %6 : vector<152x512xf32>
    %8 = arith.truncf %7 : vector<152x512xf32> to vector<152x512xbf16>
    %c0_6 = arith.constant 0 : index
    %c0_7 = arith.constant 0 : index
    %9 = vector.load %arg4[%c0_6, %c0_7] : memref<512x256xbf16, #tpu.memory_space<vmem>>, vector<512x256xbf16>
    %cst_8 = arith.constant dense<0.000000e+00> : vector<152x256xf32>
    %10 = tpu.matmul %8, %9, %cst_8 {dimension_numbers = #tpu.dot_dimension_numbers<[1], [0], [0], [1], [0, 0, 1, 1], [], []>} : vector<152x512xbf16>, vector<512x256xbf16>, vector<152x256xf32> -> vector<152x256xf32>
    %c0_9 = arith.constant 0 : index
    %c0_10 = arith.constant 0 : index
    %11 = vector.load %arg5[%c0_9, %c0_10] : memref<1x256xf32, #tpu.memory_space<vmem>>, vector<1x256xf32>
    %12 = vector.broadcast %11 : vector<1x256xf32> to vector<152x256xf32>
    %13 = arith.addf %10, %12 : vector<152x256xf32>
    %cst_11 = arith.constant 0.000000e+00 : f32
    %14 = vector.broadcast %cst_11 : f32 to vector<152x256xf32>
    %15 = arith.maximumf %13, %14 : vector<152x256xf32>
    %16 = arith.truncf %15 : vector<152x256xf32> to vector<152x256xbf16>
    %c0_12 = arith.constant 0 : index
    %c0_13 = arith.constant 0 : index
    %17 = vector.load %arg6[%c0_12, %c0_13] : memref<256x128xbf16, #tpu.memory_space<vmem>>, vector<256x128xbf16>
    %cst_14 = arith.constant dense<0.000000e+00> : vector<152x128xf32>
    %18 = tpu.matmul %16, %17, %cst_14 {dimension_numbers = #tpu.dot_dimension_numbers<[1], [0], [0], [1], [0, 0, 1, 1], [], []>} : vector<152x256xbf16>, vector<256x128xbf16>, vector<152x128xf32> -> vector<152x128xf32>
    %c0_15 = arith.constant 0 : index
    %c0_16 = arith.constant 0 : index
    %19 = vector.load %arg7[%c0_15, %c0_16] : memref<1x128xf32, #tpu.memory_space<vmem>>, vector<1x128xf32>
    %20 = vector.broadcast %19 : vector<1x128xf32> to vector<152x128xf32>
    %21 = arith.addf %18, %20 : vector<152x128xf32>
    %cst_17 = arith.constant 0.000000e+00 : f32
    %22 = vector.broadcast %cst_17 : f32 to vector<152x128xf32>
    %23 = arith.maximumf %21, %22 : vector<152x128xf32>
    %24 = arith.truncf %23 : vector<152x128xf32> to vector<152x128xbf16>
    %c0_18 = arith.constant 0 : index
    %c0_19 = arith.constant 0 : index
    %25 = vector.load %arg8[%c0_18, %c0_19] : memref<128x9xbf16, #tpu.memory_space<vmem>>, vector<128x9xbf16>
    %cst_20 = arith.constant dense<0.000000e+00> : vector<152x9xf32>
    %26 = tpu.matmul %24, %25, %cst_20 {dimension_numbers = #tpu.dot_dimension_numbers<[1], [0], [0], [1], [0, 0, 1, 1], [], []>} : vector<152x128xbf16>, vector<128x9xbf16>, vector<152x9xf32> -> vector<152x9xf32>
    %c0_21 = arith.constant 0 : index
    %c0_22 = arith.constant 0 : index
    %27 = vector.load %arg9[%c0_21, %c0_22] : memref<1x9xf32, #tpu.memory_space<vmem>>, vector<1x9xf32>
    %28 = vector.broadcast %27 : vector<1x9xf32> to vector<152x9xf32>
    %29 = arith.addf %26, %28 : vector<152x9xf32>
    %c0_23 = arith.constant 0 : index
    %c0_24 = arith.constant 0 : index
    %30 = vector.load %arg10[%c0_23, %c0_24] : memref<152x9xf32, #tpu.memory_space<vmem>>, vector<152x9xf32>
    tpu.vector_store %arg10[%c0_23, %c0_24], %29 {strides = array<i32>} : memref<152x9xf32, #tpu.memory_space<vmem>>, vector<152x9xf32>,
    return
  }
  func.func @transform_0(%arg0: i32) -> (i32, i32) {
    %c0_i32 = arith.constant 0 : i32
    %c0_i32_0 = arith.constant 0 : i32
    return %arg0, %c0_i32 : i32, i32
  }
  func.func @transform_1(%arg0: i32) -> (i32, i32) {
    %c0_i32 = arith.constant 0 : i32
    %c0_i32_0 = arith.constant 0 : i32
    %c0_i32_1 = arith.constant 0 : i32
    return %c0_i32, %c0_i32_0 : i32, i32
  }
  func.func @transform_2(%arg0: i32) -> (i32, i32) {
    %c0_i32 = arith.constant 0 : i32
    %c0_i32_0 = arith.constant 0 : i32
    %c0_i32_1 = arith.constant 0 : i32
    return %c0_i32, %c0_i32_0 : i32, i32
  }
  func.func @transform_3(%arg0: i32) -> (i32, i32) {
    %c0_i32 = arith.constant 0 : i32
    %c0_i32_0 = arith.constant 0 : i32
    %c0_i32_1 = arith.constant 0 : i32
    return %c0_i32, %c0_i32_0 : i32, i32
  }
  func.func @transform_4(%arg0: i32) -> (i32, i32) {
    %c0_i32 = arith.constant 0 : i32
    %c0_i32_0 = arith.constant 0 : i32
    %c0_i32_1 = arith.constant 0 : i32
    return %c0_i32, %c0_i32_0 : i32, i32
  }
  func.func @transform_5(%arg0: i32) -> (i32, i32) {
    %c0_i32 = arith.constant 0 : i32
    %c0_i32_0 = arith.constant 0 : i32
    %c0_i32_1 = arith.constant 0 : i32
    return %c0_i32, %c0_i32_0 : i32, i32
  }
  func.func @transform_6(%arg0: i32) -> (i32, i32) {
    %c0_i32 = arith.constant 0 : i32
    %c0_i32_0 = arith.constant 0 : i32
    %c0_i32_1 = arith.constant 0 : i32
    return %c0_i32, %c0_i32_0 : i32, i32
  }
  func.func @transform_7(%arg0: i32) -> (i32, i32) {
    %c0_i32 = arith.constant 0 : i32
    %c0_i32_0 = arith.constant 0 : i32
    %c0_i32_1 = arith.constant 0 : i32
    return %c0_i32, %c0_i32_0 : i32, i32
  }
  func.func @transform_8(%arg0: i32) -> (i32, i32) {
    %c0_i32 = arith.constant 0 : i32
    %c0_i32_0 = arith.constant 0 : i32
    %c0_i32_1 = arith.constant 0 : i32
    return %c0_i32, %c0_i32_0 : i32, i32
  }
  func.func @transform_9(%arg0: i32) -> (i32, i32) {
    %c0_i32 = arith.constant 0 : i32
    %c0_i32_0 = arith.constant 0 : i32
    return %arg0, %c0_i32 : i32, i32
  }
}

</mosaic_0001>

<llo_original>
// kernel: mlp_forward.1
$region0: #{mlp_forward.1}
  #allocation0 [shape = 'u32[]', space=smem, size = 0x4, offset = 0x4, fixed_abs, tag = 'smem constant byte address 0x4 - core index']
  #allocation1 [shape = 'u32[144,128]{1,0:T(1,128)}', space=vmem, size = 0x12000, scoped, tag = 'internal scratch']
  %s0 = inlined_call_operand.vmem [shape: bf16[300,64], index: 0, kind: input, shape index: {}]
  %s1 = inlined_call_operand.vmem [shape: bf16[64,512], index: 1, kind: input, shape index: {}]
  %s2 = inlined_call_operand.vmem [shape: f32[1,512], index: 2, kind: input, shape index: {}]
  %s3 = inlined_call_operand.vmem [shape: bf16[512,256], index: 3, kind: input, shape index: {}]
  %s4 = inlined_call_operand.vmem [shape: f32[1,256], index: 4, kind: input, shape index: {}]
  %s5 = inlined_call_operand.vmem [shape: bf16[256,128], index: 5, kind: input, shape index: {}]
  %s6 = inlined_call_operand.vmem [shape: f32[1,128], index: 6, kind: input, shape index: {}]
  %s7 = inlined_call_operand.vmem [shape: bf16[128,9], index: 7, kind: input, shape index: {}]
  %s8 = inlined_call_operand.vmem [shape: f32[1,9], index: 8, kind: input, shape index: {}]
  %s9 = inlined_call_operand.vmem [shape: f32[300,9], index: 9, kind: output, shape index: {}]
  %s10 = sld [smem:[#allocation0]]
  $region69: #{mlp_forward.1} parent=0
    _
  %s12 = ssub.s32 1, %s10
  %s13 = scalar_select 0, %s12, %s10
  loop: start=0, step=1, limit=4
  $region2: #{mlp_forward.1} parent=0 // loop_pre_header
    _
  $region3: #{mlp_forward.1} parent=0 // loop_header
    %s15 = sphi 0, %s19
    %p16 = scmp.ge.s32.totalorder %s15, 4
    %s25 = sphi 0, %s27
    %s28 = sphi 0, %s25
    %s29 = sphi 0, %s28
    %s45 = sphi 0, %s29
    %s49 = sphi 0, %s49
    %s51 = sphi 0, %s49
    %s52 = sphi 0, %s51
    %s66 = sphi 0, %s52
    %s70 = sphi 0, %s70
    %s72 = sphi 0, %s70
    %s73 = sphi 0, %s72
    %s87 = sphi 0, %s73
    %s91 = sphi 0, %s91
    %s93 = sphi 0, %s91
    %s94 = sphi 0, %s93
    %s108 = sphi 0, %s94
    %s112 = sphi 0, %s112
    %s114 = sphi 0, %s112
    %s115 = sphi 0, %s114
    %s129 = sphi 0, %s115
    %s133 = sphi 0, %s133
    %s135 = sphi 0, %s133
    %s136 = sphi 0, %s135
    %s150 = sphi 0, %s136
    %s154 = sphi 0, %s154
    %s156 = sphi 0, %s154
    %s157 = sphi 0, %s156
    %s171 = sphi 0, %s157
    %s175 = sphi 0, %s175
    %s177 = sphi 0, %s175
    %s178 = sphi 0, %s177
    %s192 = sphi 0, %s178
    %s196 = sphi 0, %s196
    %s198 = sphi 0, %s196
    %s199 = sphi 0, %s198
    %s213 = sphi 0, %s199
    %s219 = sphi 0, %s221
    %s222 = sphi 0, %s219
    %s223 = sphi 0, %s222
    %s239 = sphi 0, %s223
  $region4: #{mlp_forward.1} parent=0 // loop_header_branch
    %18 = sbr.rel (%p16) target = $region8
  $region5: #{mlp_forward.1} parent=0 // loop_body
    %s20 = ssub.s32 %s15, 1
    %s21 = ssub.s32 %s15, 2
    %s22 = sadd.s32 %s15, 1
    %s23 = ssub.s32 %s15, %s22
    %p24 = scmp.eq.s32.totalorder %s23, 0
    %s26 = sadd.s32 %s25, 1
    %s27 = scalar_select %p24, %s25, %s26
    %p30 = pneg %p24
    %p31 = scmp.eq.s32.totalorder %s15, 1
    %p32 = por %p30, %p31
    %p33 = scmp.ne.s32.totalorder %s25, %s28
    %p34 = scmp.eq.s32.totalorder %s15, 0
    %p35 = por %p33, %p34
    %p36 = scmp.ne.s32.totalorder %s25, %s28
    %p37 = scmp.eq.s32.totalorder %s20, 1
    %p38 = por %p36, %p37
    %p39 = scmp.ne.s32.totalorder %s28, %s29
    %p40 = scmp.eq.s32.totalorder %s20, 0
    %p41 = por %p39, %p40
    %p42 = scmp.ne.s32.totalorder %s28, %s29
    %p43 = scmp.eq.s32.totalorder %s21, 1
    %p44 = por %p42, %p43
    %p46 = scmp.ne.s32.totalorder %s29, %s45
    %p47 = scmp.eq.s32.totalorder %s21, 0
    %p48 = por %p46, %p47
    %s50 = sadd.s32 %s49, 1
    %p53 = scmp.eq.s32.totalorder %s15, 1
    %p54 = scmp.ne.s32.totalorder %s49, %s51
    %p55 = scmp.eq.s32.totalorder %s15, 0
    %p56 = por %p54, %p55
    %p57 = scmp.ne.s32.totalorder %s49, %s51
    %p58 = scmp.eq.s32.totalorder %s20, 1
    %p59 = por %p57, %p58
    %p60 = scmp.ne.s32.totalorder %s51, %s52
    %p61 = scmp.eq.s32.totalorder %s20, 0
    %p62 = por %p60, %p61
    %p63 = scmp.ne.s32.totalorder %s51, %s52
    %p64 = scmp.eq.s32.totalorder %s21, 1
    %p65 = por %p63, %p64
    %p67 = scmp.ne.s32.totalorder %s52, %s66
    %p68 = scmp.eq.s32.totalorder %s21, 0
    %p69 = por %p67, %p68
    %s71 = sadd.s32 %s70, 1
    %p74 = scmp.eq.s32.totalorder %s15, 1
    %p75 = scmp.ne.s32.totalorder %s70, %s72
    %p76 = scmp.eq.s32.totalorder %s15, 0
    %p77 = por %p75, %p76
    %p78 = scmp.ne.s32.totalorder %s70, %s72
    %p79 = scmp.eq.s32.totalorder %s20, 1
    %p80 = por %p78, %p79
    %p81 = scmp.ne.s32.totalorder %s72, %s73
    %p82 = scmp.eq.s32.totalorder %s20, 0
    %p83 = por %p81, %p82
    %p84 = scmp.ne.s32.totalorder %s72, %s73
    %p85 = scmp.eq.s32.totalorder %s21, 1
    %p86 = por %p84, %p85
    %p88 = scmp.ne.s32.totalorder %s73, %s87
    %p89 = scmp.eq.s32.totalorder %s21, 0
    %p90 = por %p88, %p89
    %s92 = sadd.s32 %s91, 1
    %p95 = scmp.eq.s32.totalorder %s15, 1
    %p96 = scmp.ne.s32.totalorder %s91, %s93
    %p97 = scmp.eq.s32.totalorder %s15, 0
    %p98 = por %p96, %p97
    %p99 = scmp.ne.s32.totalorder %s91, %s93
    %p100 = scmp.eq.s32.totalorder %s20, 1
    %p101 = por %p99, %p100
    %p102 = scmp.ne.s32.totalorder %s93, %s94
    %p103 = scmp.eq.s32.totalorder %s20, 0
    %p104 = por %p102, %p103
    %p105 = scmp.ne.s32.totalorder %s93, %s94
    %p106 = scmp.eq.s32.totalorder %s21, 1
    %p107 = por %p105, %p106
    %p109 = scmp.ne.s32.totalorder %s94, %s108
    %p110 = scmp.eq.s32.totalorder %s21, 0
    %p111 = por %p109, %p110
    %s113 = sadd.s32 %s112, 1
    %p116 = scmp.eq.s32.totalorder %s15, 1
    %p117 = scmp.ne.s32.totalorder %s112, %s114
    %p118 = scmp.eq.s32.totalorder %s15, 0
    %p119 = por %p117, %p118
    %p120 = scmp.ne.s32.totalorder %s112, %s114
    %p121 = scmp.eq.s32.totalorder %s20, 1
    %p122 = por %p120, %p121
    %p123 = scmp.ne.s32.totalorder %s114, %s115
    %p124 = scmp.eq.s32.totalorder %s20, 0
    %p125 = por %p123, %p124
    %p126 = scmp.ne.s32.totalorder %s114, %s115
    %p127 = scmp.eq.s32.totalorder %s21, 1
    %p128 = por %p126, %p127
    %p130 = scmp.ne.s32.totalorder %s115, %s129
    %p131 = scmp.eq.s32.totalorder %s21, 0
    %p132 = por %p130, %p131
    %s134 = sadd.s32 %s133, 1
    %p137 = scmp.eq.s32.totalorder %s15, 1
    %p138 = scmp.ne.s32.totalorder %s133, %s135
    %p139 = scmp.eq.s32.totalorder %s15, 0
    %p140 = por %p138, %p139
    %p141 = scmp.ne.s32.totalorder %s133, %s135
    %p142 = scmp.eq.s32.totalorder %s20, 1
    %p143 = por %p141, %p142
    %p144 = scmp.ne.s32.totalorder %s135, %s136
    %p145 = scmp.eq.s32.totalorder %s20, 0
    %p146 = por %p144, %p145
    %p147 = scmp.ne.s32.totalorder %s135, %s136
    %p148 = scmp.eq.s32.totalorder %s21, 1
    %p149 = por %p147, %p148
    %p151 = scmp.ne.s32.totalorder %s136, %s150
    %p152 = scmp.eq.s32.totalorder %s21, 0
    %p153 = por %p151, %p152
    %s155 = sadd.s32 %s154, 1
    %p158 = scmp.eq.s32.totalorder %s15, 1
    %p159 = scmp.ne.s32.totalorder %s154, %s156
    %p160 = scmp.eq.s32.totalorder %s15, 0
    %p161 = por %p159, %p160
    %p162 = scmp.ne.s32.totalorder %s154, %s156
    %p163 = scmp.eq.s32.totalorder %s20, 1
    %p164 = por %p162, %p163
    %p165 = scmp.ne.s32.totalorder %s156, %s157
    %p166 = scmp.eq.s32.totalorder %s20, 0
    %p167 = por %p165, %p166
    %p168 = scmp.ne.s32.totalorder %s156, %s157
    %p169 = scmp.eq.s32.totalorder %s21, 1
    %p170 = por %p168, %p169
    %p172 = scmp.ne.s32.totalorder %s157, %s171
    %p173 = scmp.eq.s32.totalorder %s21, 0
    %p174 = por %p172, %p173
    %s176 = sadd.s32 %s175, 1
    %p179 = scmp.eq.s32.totalorder %s15, 1
    %p180 = scmp.ne.s32.totalorder %s175, %s177
    %p181 = scmp.eq.s32.totalorder %s15, 0
    %p182 = por %p180, %p181
    %p183 = scmp.ne.s32.totalorder %s175, %s177
    %p184 = scmp.eq.s32.totalorder %s20, 1
    %p185 = por %p183, %p184
    %p186 = scmp.ne.s32.totalorder %s177, %s178
    %p187 = scmp.eq.s32.totalorder %s20, 0
    %p188 = por %p186, %p187
    %p189 = scmp.ne.s32.totalorder %s177, %s178
    %p190 = scmp.eq.s32.totalorder %s21, 1
    %p191 = por %p189, %p190
    %p193 = scmp.ne.s32.totalorder %s178, %s192
    %p194 = scmp.eq.s32.totalorder %s21, 0
    %p195 = por %p193, %p194
    %s197 = sadd.s32 %s196, 1
    %p200 = scmp.eq.s32.totalorder %s15, 1
    %p201 = scmp.ne.s32.totalorder %s196, %s198
    %p202 = scmp.eq.s32.totalorder %s15, 0
    %p203 = por %p201, %p202
    %p204 = scmp.ne.s32.totalorder %s196, %s198
    %p205 = scmp.eq.s32.totalorder %s20, 1
    %p206 = por %p204, %p205
    %p207 = scmp.ne.s32.totalorder %s198, %s199
    %p208 = scmp.eq.s32.totalorder %s20, 0
    %p209 = por %p207, %p208
    %p210 = scmp.ne.s32.totalorder %s198, %s199
    %p211 = scmp.eq.s32.totalorder %s21, 1
    %p212 = por %p210, %p211
    %p214 = scmp.ne.s32.totalorder %s199, %s213
    %p215 = scmp.eq.s32.totalorder %s21, 0
    %p216 = por %p214, %p215
    %s217 = ssub.s32 %s15, %s22
    %p218 = scmp.eq.s32.totalorder %s217, 0
    %s220 = sadd.s32 %s219, 1
    %s221 = scalar_select %p218, %s219, %s220
    %p224 = pneg %p218
    %p225 = scmp.eq.s32.totalorder %s15, 1
    %p226 = por %p224, %p225
    %p227 = scmp.ne.s32.totalorder %s219, %s222
    %p228 = scmp.eq.s32.totalorder %s15, 0
    %p229 = por %p227, %p228
    %p230 = scmp.ne.s32.totalorder %s219, %s222
    %p231 = scmp.eq.s32.totalorder %s20, 1
    %p232 = por %p230, %p231
    %p233 = scmp.ne.s32.totalorder %s222, %s223
    %p234 = scmp.eq.s32.totalorder %s20, 0
    %p235 = por %p233, %p234
    %p236 = scmp.ne.s32.totalorder %s222, %s223
    %p237 = scmp.eq.s32.totalorder %s21, 1
    %p238 = por %p236, %p237
    %p240 = scmp.ne.s32.totalorder %s223, %s239
    %p241 = scmp.eq.s32.totalorder %s21, 0
    %p242 = por %p240, %p241
    %p243 = scmp.le.s32.totalorder 1, %s15
    %p244 = scmp.lt.s32.totalorder %s15, 3
    %p245 = pnand %p243, %p244
    %p246 = pneg %p245
    // Predicated region
    $region9: #{mlp_forward.1} parent=5 // pred_check
      _
    $region10: #{mlp_forward.1} parent=5 // pred_check_branch
      %248 = sbr.rel (%p245) target = $region12
    $region11: #{mlp_forward.1} parent=5 // pred_region
      %s249 = ssub.s32 %s15, 1
      // Predicated region
      $region13: #{mlp_forward.1} parent=11 // pred_check
        %p250 = pneg %p62
      $region14: #{mlp_forward.1} parent=11 // pred_check_branch
        %252 = sbr.rel (%p250) target = $region16
      $region15: #{mlp_forward.1} parent=11 // pred_region
        _
      $region16: #{mlp_forward.1} parent=11 // pred_fallthru
        _
      // Predicated region
      $region17: #{mlp_forward.1} parent=11 // pred_check
        %p253 = pneg %p83
      $region18: #{mlp_forward.1} parent=11 // pred_check_branch
        %255 = sbr.rel (%p253) target = $region20
      $region19: #{mlp_forward.1} parent=11 // pred_region
        _
      $region20: #{mlp_forward.1} parent=11 // pred_fallthru
        _
      // Predicated region
      $region21: #{mlp_forward.1} parent=11 // pred_check
        %p256 = pneg %p104
      $region22: #{mlp_forward.1} parent=11 // pred_check_branch
        %258 = sbr.rel (%p256) target = $region24
      $region23: #{mlp_forward.1} parent=11 // pred_region
        _
      $region24: #{mlp_forward.1} parent=11 // pred_fallthru
        _
      // Predicated region
      $region25: #{mlp_forward.1} parent=11 // pred_check
        %p259 = pneg %p125
      $region26: #{mlp_forward.1} parent=11 // pred_check_branch
        %261 = sbr.rel (%p259) target = $region28
      $region27: #{mlp_forward.1} parent=11 // pred_region
        _
      $region28: #{mlp_forward.1} parent=11 // pred_fallthru
        _
      // Predicated region
      $region29: #{mlp_forward.1} parent=11 // pred_check
        %p262 = pneg %p146
      $region30: #{mlp_forward.1} parent=11 // pred_check_branch
        %264 = sbr.rel (%p262) target = $region32
      $region31: #{mlp_forward.1} parent=11 // pred_region
        _
      $region32: #{mlp_forward.1} parent=11 // pred_fallthru
        _
      // Predicated region
      $region33: #{mlp_forward.1} parent=11 // pred_check
        %p265 = pneg %p167
      $region34: #{mlp_forward.1} parent=11 // pred_check_branch
        %267 = sbr.rel (%p265) target = $region36
      $region35: #{mlp_forward.1} parent=11 // pred_region
        _
      $region36: #{mlp_forward.1} parent=11 // pred_fallthru
        _
      // Predicated region
      $region37: #{mlp_forward.1} parent=11 // pred_check
        %p268 = pneg %p188
      $region38: #{mlp_forward.1} parent=11 // pred_check_branch
        %270 = sbr.rel (%p268) target = $region40
      $region39: #{mlp_forward.1} parent=11 // pred_region
        _
      $region40: #{mlp_forward.1} parent=11 // pred_fallthru
        _
      // Predicated region
      $region41: #{mlp_forward.1} parent=11 // pred_check
        %p271 = pneg %p209
      $region42: #{mlp_forward.1} parent=11 // pred_check_branch
        %273 = sbr.rel (%p271) target = $region44
      $region43: #{mlp_forward.1} parent=11 // pred_region
        _
      $region44: #{mlp_forward.1} parent=11 // pred_fallthru
        _
    $region12: #{mlp_forward.1} parent=5 // pred_fallthru
      _
    %p274 = scmp.lt.s32.totalorder %s15, 2
    // Predicated region
    $region45: #{mlp_forward.1} parent=5 // pred_check
      %p275 = pneg %p274
    $region46: #{mlp_forward.1} parent=5 // pred_check_branch
      %277 = sbr.rel (%p275) target = $region48
    $region47: #{mlp_forward.1} parent=5 // pred_region
      // Predicated region
      $region49: #{mlp_forward.1} parent=47 // pred_check
        %p278 = pneg %p35
      $region50: #{mlp_forward.1} parent=47 // pred_check_branch
        %280 = sbr.rel (%p278) target = $region52
      $region51: #{mlp_forward.1} parent=47 // pred_region
        %s281 = smul.u32 19, %s15
        %p282 = scmp.lt.s32.totalorder %s281, 37
        %s283 = scalar_select %p282, %s281, 37
        %s284 = smul.addr %s283, 4
        %s285 = scalar_lea.vmem %s0, %s284
        %s286 = smul.u32 19, %s15
      $region52: #{mlp_forward.1} parent=47 // pred_fallthru
        _
    $region48: #{mlp_forward.1} parent=5 // pred_fallthru
      _
    %p287 = scmp.le.s32.totalorder 1, %s15
    %p288 = scmp.lt.s32.totalorder %s15, 3
    %p289 = pnand %p287, %p288
    %p290 = pneg %p289
    // Predicated region
    $region53: #{mlp_forward.1} parent=5 // pred_check
      _
    $region54: #{mlp_forward.1} parent=5 // pred_check_branch
      %292 = sbr.rel (%p289) target = $region56
    $region55: #{mlp_forward.1} parent=5 // pred_region
      %s293 = ssub.s32 %s15, 1
      %s294 = smul.u32 19, %s20
      %p295 = scmp.lt.s32.totalorder %s294, 37
      %s296 = scalar_select %p295, %s294, 37
      %s297 = smul.addr %s296, 4
      %s298 = scalar_lea.vmem %s0, %s297
      %p299 = pneg %p41
      %p300 = pneg %p38
      %p301 = pneg %p62
      %p302 = pneg %p59
      %p303 = pneg %p83
      %p304 = pneg %p80
      %p305 = pneg %p104
      %p306 = pneg %p101
      %p307 = pneg %p125
      %p308 = pneg %p122
      %p309 = pneg %p146
      %p310 = pneg %p143
      %p311 = pneg %p167
      %p312 = pneg %p164
      %p313 = pneg %p188
      %p314 = pneg %p185
      %p315 = pneg %p209
      %p316 = pneg %p206
      %p317 = pneg %p235
      %p318 = pneg %p232
      %s319 = smul.u32 19, %s20
      %p320 = scmp.lt.s32.totalorder %s319, 37
      %s321 = scalar_select %p320, %s319, 37
      %s322 = smul.addr %s321, 8
      %s323 = scalar_lea.vmem %s9, %s322
      %s324 = smul.u32 19, %s20
      %p325 = scmp.lt.s32.totalorder %s324, 37
      %s326 = scalar_select %p325, %s324, 37
      %s327 = smul.addr %s326, 4
      %s328 = scalar_lea.vmem %s0, %s327
      %s329 = smul.u32 19, %s20
      %s330 = smul.u32 19, %s20
      %p331 = scmp.lt.s32.totalorder %s330, 37
      %s332 = scalar_select %p331, %s330, 37
      %s333 = smul.addr %s332, 8
      %s334 = scalar_lea.vmem %s9, %s333
      %s335 = smul.u32 19, %s20
      %v337 = vld [vmem:[%s328] sm:$0xf]
      %v338 = vld [vmem:[%s328 + $0x4] sm:$0xf]
      %v339 = vld [vmem:[%s328 + $0x8] sm:$0xf]
      %v340 = vld [vmem:[%s328 + $0xc] sm:$0xf]
      %v341 = vld [vmem:[%s328 + $0x10] sm:$0xf]
      %v342 = vld [vmem:[%s328 + $0x14] sm:$0xf]
      %v343 = vld [vmem:[%s328 + $0x18] sm:$0xf]
      %v344 = vld [vmem:[%s328 + $0x1c] sm:$0xf]
      %v345 = vld [vmem:[%s328 + $0x20] sm:$0xf]
      %v346 = vld [vmem:[%s328 + $0x24] sm:$0xf]
      %v347 = vld [vmem:[%s328 + $0x28] sm:$0xf]
      %v348 = vld [vmem:[%s328 + $0x2c] sm:$0xf]
      %v349 = vld [vmem:[%s328 + $0x30] sm:$0xf]
      %v350 = vld [vmem:[%s328 + $0x34] sm:$0xf]
      %v351 = vld [vmem:[%s328 + $0x38] sm:$0xf]
      %v352 = vld [vmem:[%s328 + $0x3c] sm:$0xf]
      %v353 = vld [vmem:[%s328 + $0x40] sm:$0xf]
      %v354 = vld [vmem:[%s328 + $0x44] sm:$0xf]
      %v355 = vld [vmem:[%s328 + $0x48] sm:$0xf]
      %v356 = vld [vmem:[%s1] sm:$0xff]
      %v357 = vld [vmem:[%s1 + $0x8] sm:$0xff]
      %v358 = vld [vmem:[%s1 + $0x10] sm:$0xff]
      %v359 = vld [vmem:[%s1 + $0x18] sm:$0xff]
      %v360 = vld [vmem:[%s1 + $0x20] sm:$0xff]
      %v361 = vld [vmem:[%s1 + $0x28] sm:$0xff]
      %v362 = vld [vmem:[%s1 + $0x30] sm:$0xff]
      %v363 = vld [vmem:[%s1 + $0x38] sm:$0xff]
      %v364 = vld [vmem:[%s1 + $0x40] sm:$0xff]
      %v365 = vld [vmem:[%s1 + $0x48] sm:$0xff]
      %v366 = vld [vmem:[%s1 + $0x50] sm:$0xff]
      %v367 = vld [vmem:[%s1 + $0x58] sm:$0xff]
      %v368 = vld [vmem:[%s1 + $0x60] sm:$0xff]
      %v369 = vld [vmem:[%s1 + $0x68] sm:$0xff]
      %v370 = vld [vmem:[%s1 + $0x70] sm:$0xff]
      %v371 = vld [vmem:[%s1 + $0x78] sm:$0xff]
      %v372 = vld [vmem:[%s2] sm:$0xf]
      %v374 = vlaneseq
      %v375 = vshrl.u32 %v374, 7
      %v376 = vsub.s32 0, %v375
      %v377 = vrot.slane %v372, %v376
      %v378 = vlaneseq
      %v379 = vshrl.u32 %v378, 7
      %v380 = vsub.s32 1, %v379
      %v381 = vrot.slane %v372, %v380
      %v382 = vlaneseq
      %v383 = vshrl.u32 %v382, 7
      %v384 = vsub.s32 2, %v383
      %v385 = vrot.slane %v372, %v384
      %v386 = vlaneseq
      %v387 = vshrl.u32 %v386, 7
      %v388 = vsub.s32 3, %v387
      %v389 = vrot.slane %v372, %v388
      %v413 = vunpack.c.l.b16 %v337
      %v414 = vunpack.c.l.b16 %v338
      %v415 = vunpack.c.l.b16 %v339
      %v416 = vunpack.c.l.b16 %v340
      %v417 = vunpack.c.l.b16 %v341
      %v418 = vunpack.c.l.b16 %v342
      %v419 = vunpack.c.l.b16 %v343
      %v420 = vunpack.c.l.b16 %v344
      %v421 = vunpack.c.l.b16 %v345
      %v422 = vunpack.c.l.b16 %v346
      %v423 = vunpack.c.l.b16 %v347
      %v424 = vunpack.c.l.b16 %v348
      %v425 = vunpack.c.l.b16 %v349
      %v426 = vunpack.c.l.b16 %v350
      %v427 = vunpack.c.l.b16 %v351
      %v428 = vunpack.c.l.b16 %v352
      %v429 = vunpack.c.l.b16 %v353
      %v430 = vunpack.c.l.b16 %v354
      %v431 = vunpack.c.l.b16 %v355
      %v432 = vpack.c.b16 %v414, %v413
      %v433 = vpack.c.b16 %v416, %v415
      %v434 = vpack.c.b16 %v418, %v417
      %v435 = vpack.c.b16 %v420, %v419
      %v436 = vpack.c.b16 %v422, %v421
      %v437 = vpack.c.b16 %v424, %v423
      %v438 = vpack.c.b16 %v426, %v425
      %v439 = vpack.c.b16 %v428, %v427
      %v440 = vpack.c.b16 %v430, %v429
      %v441 = vpack.c.b16 %v431, %v431
      %v458 = vunpack.c.l.b16 %v356
      %v459 = vunpack.c.h.b16 %v356
      %v460 = vunpack.c.l.b16 %v357
      %v461 = vunpack.c.h.b16 %v357
      %v462 = vunpack.c.l.b16 %v358
      %v463 = vunpack.c.h.b16 %v358
      %v464 = vunpack.c.l.b16 %v359
      %v465 = vunpack.c.h.b16 %v359
      %v466 = vunpack.c.l.b16 %v360
      %v467 = vunpack.c.h.b16 %v360
      %v468 = vunpack.c.l.b16 %v361
      %v469 = vunpack.c.h.b16 %v361
      %v470 = vunpack.c.l.b16 %v362
      %v471 = vunpack.c.h.b16 %v362
      %v472 = vunpack.c.l.b16 %v363
      %v473 = vunpack.c.h.b16 %v363
      %v474 = vunpack.c.l.b16 %v364
      %v475 = vunpack.c.h.b16 %v364
      %v476 = vunpack.c.l.b16 %v365
      %v477 = vunpack.c.h.b16 %v365
      %v478 = vunpack.c.l.b16 %v366
      %v479 = vunpack.c.h.b16 %v366
      %v480 = vunpack.c.l.b16 %v367
      %v481 = vunpack.c.h.b16 %v367
      %v482 = vunpack.c.l.b16 %v368
      %v483 = vunpack.c.h.b16 %v368
      %v484 = vunpack.c.l.b16 %v369
      %v485 = vunpack.c.h.b16 %v369
      %v486 = vunpack.c.l.b16 %v370
      %v487 = vunpack.c.h.b16 %v370
      %v488 = vunpack.c.l.b16 %v371
      %v489 = vunpack.c.h.b16 %v371
      %v490 = vpack.c.b16 %v462, %v458
      %v491 = vpack.c.b16 %v463, %v459
      %v492 = vpack.c.b16 %v464, %v460
      %v493 = vpack.c.b16 %v465, %v461
      %v494 = vpack.c.b16 %v470, %v466
      %v495 = vpack.c.b16 %v471, %v467
      %v496 = vpack.c.b16 %v472, %v468
      %v497 = vpack.c.b16 %v473, %v469
      %v498 = vpack.c.b16 %v478, %v474
      %v499 = vpack.c.b16 %v479, %v475
      %v500 = vpack.c.b16 %v480, %v476
      %v501 = vpack.c.b16 %v481, %v477
      %v502 = vpack.c.b16 %v486, %v482
      %v503 = vpack.c.b16 %v487, %v483
      %v504 = vpack.c.b16 %v488, %v484
      %v505 = vpack.c.b16 %v489, %v485
      %vm522 = vcmask 523264
      %v524 = vsel %vm522, %v432, 0
      %v527 = vsel %vm522, %v433, 0
      %v530 = vsel %vm522, %v434, 0
      %v533 = vsel %vm522, %v435, 0
      %v536 = vsel %vm522, %v436, 0
      %v539 = vsel %vm522, %v437, 0
      %v542 = vsel %vm522, %v438, 0
      %v545 = vsel %vm522, %v439, 0
      %v548 = vsel %vm522, %v440, 0
      %v551 = vsel %vm522, %v441, 0
      %553 = vmatprep.subr.bf16.mxu0 0
      %554 = vmatpush1.bf16.msra.mxu0 0
      %555 = vmatprep.subr.bf16.mxu0 0
      %556 = vmatpush1.bf16.msra.mxu0 0
      %557 = vmatprep.subr.bf16.mxu0 0
      %558 = vmatpush1.bf16.msra.mxu0 0
      %559 = vmatprep.subr.bf16.mxu0 0
      %560 = vmatpush1.bf16.msra.mxu0 0
      %561 = vmatprep.subr.bf16.mxu0 %v503
      %562 = vmatpush1.bf16.msra.mxu0 %v502
      %563 = vmatprep.subr.bf16.mxu0 %v499
      %564 = vmatpush1.bf16.msra.mxu0 %v498
      %565 = vmatprep.subr.bf16.mxu0 %v495
      %566 = vmatpush1.bf16.msra.mxu0 %v494
      %567 = vmatprep.subr.bf16.mxu0 %v491
      %568 = vmatpush1.bf16.msra.mxu0 %v490
      %569 = vmatprep.subr.bf16.mxu0 0
      %570 = vmatpush2.bf16.msra.mxu0 0
      %571 = vmatprep.subr.bf16.mxu0 0
      %572 = vmatpush2.bf16.msra.mxu0 0
      %573 = vmatprep.subr.bf16.mxu0 0
      %574 = vmatpush2.bf16.msra.mxu0 0
      %575 = vmatprep.subr.bf16.mxu0 0
      %576 = vmatpush2.bf16.msra.mxu0 0
      %577 = vmatprep.subr.bf16.mxu0 0
      %578 = vmatpush2.bf16.msra.mxu0 0
      %579 = vmatprep.subr.bf16.mxu0 0
      %580 = vmatpush2.bf16.msra.mxu0 0
      %581 = vmatprep.subr.bf16.mxu0 0
      %582 = vmatpush2.bf16.msra.mxu0 0
      %583 = vmatprep.subr.bf16.mxu0 0
      %584 = vmatpush2.bf16.msra.mxu0 0
      %585 = vmatprep.mubr.bf16.mxu0 0
      %586 = vmatmul.mubr.bf16.gmra.mxu0 %v524
      %v587 = vpop.f32.mrf.mxu0
      %v588 = vadd.f32 %v377, %v587
      %v589 = vpop.f32.mrf.mxu0
      %v590 = vadd.f32 %v381, %v589
      %v591 = vpop.f32.mrf.mxu0
      %v592 = vadd.f32 %v377, %v591
      %v593 = vpop.f32.mrf.mxu0
      %v594 = vadd.f32 %v381, %v593
      %595 = vmatprep.mubr.bf16.mxu0 0
      %596 = vmatmul.mubr.bf16.gmra.mxu0 %v527
      %v597 = vpop.f32.mrf.mxu0
      %v598 = vadd.f32 %v377, %v597
      %v599 = vpop.f32.mrf.mxu0
      %v600 = vadd.f32 %v381, %v599
      %v601 = vpop.f32.mrf.mxu0
      %v602 = vadd.f32 %v377, %v601
      %v603 = vpop.f32.mrf.mxu0
      %v604 = vadd.f32 %v381, %v603
      %605 = vmatprep.mubr.bf16.mxu0 0
      %606 = vmatmul.mubr.bf16.gmra.mxu0 %v530
      %v607 = vpop.f32.mrf.mxu0
      %v608 = vadd.f32 %v377, %v607
      %v609 = vpop.f32.mrf.mxu0
      %v610 = vadd.f32 %v381, %v609
      %v611 = vpop.f32.mrf.mxu0
      %v612 = vadd.f32 %v377, %v611
      %v613 = vpop.f32.mrf.mxu0
      %v614 = vadd.f32 %v381, %v613
      %615 = vmatprep.mubr.bf16.mxu0 0
      %616 = vmatmul.mubr.bf16.gmra.mxu0 %v533
      %v617 = vpop.f32.mrf.mxu0
      %v618 = vadd.f32 %v377, %v617
      %v619 = vpop.f32.mrf.mxu0
      %v620 = vadd.f32 %v381, %v619
      %v621 = vpop.f32.mrf.mxu0
      %v622 = vadd.f32 %v377, %v621
      %v623 = vpop.f32.mrf.mxu0
      %v624 = vadd.f32 %v381, %v623
      %625 = vmatprep.mubr.bf16.mxu0 0
      %626 = vmatmul.mubr.bf16.gmra.mxu0 %v536
      %v627 = vpop.f32.mrf.mxu0
      %v628 = vadd.f32 %v377, %v627
      %v629 = vpop.f32.mrf.mxu0
      %v630 = vadd.f32 %v381, %v629
      %v631 = vpop.f32.mrf.mxu0
      %v632 = vadd.f32 %v377, %v631
      %v633 = vpop.f32.mrf.mxu0
      %v634 = vadd.f32 %v381, %v633
      %635 = vmatprep.mubr.bf16.mxu0 0
      %636 = vmatmul.mubr.bf16.gmra.mxu0 %v539
      %v637 = vpop.f32.mrf.mxu0
      %v638 = vadd.f32 %v377, %v637
      %v639 = vpop.f32.mrf.mxu0
      %v640 = vadd.f32 %v381, %v639
      %v641 = vpop.f32.mrf.mxu0
      %v642 = vadd.f32 %v377, %v641
      %v643 = vpop.f32.mrf.mxu0
      %v644 = vadd.f32 %v381, %v643
      %645 = vmatprep.mubr.bf16.mxu0 0
      %646 = vmatmul.mubr.bf16.gmra.mxu0 %v542
      %v647 = vpop.f32.mrf.mxu0
      %v648 = vadd.f32 %v377, %v647
      %v649 = vpop.f32.mrf.mxu0
      %v650 = vadd.f32 %v381, %v649
      %v651 = vpop.f32.mrf.mxu0
      %v652 = vadd.f32 %v377, %v651
      %v653 = vpop.f32.mrf.mxu0
      %v654 = vadd.f32 %v381, %v653
      %655 = vmatprep.mubr.bf16.mxu0 0
      %656 = vmatmul.mubr.bf16.gmra.mxu0 %v545
      %v657 = vpop.f32.mrf.mxu0
      %v658 = vadd.f32 %v377, %v657
      %v659 = vpop.f32.mrf.mxu0
      %v660 = vadd.f32 %v381, %v659
      %v661 = vpop.f32.mrf.mxu0
      %v662 = vadd.f32 %v377, %v661
      %v663 = vpop.f32.mrf.mxu0
      %v664 = vadd.f32 %v381, %v663
      %665 = vmatprep.mubr.bf16.mxu0 0
      %666 = vmatmul.mubr.bf16.gmra.mxu0 %v548
      %v667 = vpop.f32.mrf.mxu0
      %v668 = vadd.f32 %v377, %v667
      %v669 = vpop.f32.mrf.mxu0
      %v670 = vadd.f32 %v381, %v669
      %v671 = vpop.f32.mrf.mxu0
      %v672 = vadd.f32 %v377, %v671
      %v673 = vpop.f32.mrf.mxu0
      %v674 = vadd.f32 %v381, %v673
      %675 = vmatprep.mubr.bf16.mxu0 0
      %676 = vmatmul.mubr.bf16.gmra.mxu0 %v551
      %v677 = vpop.f32.mrf.mxu0
      %v678 = vadd.f32 %v377, %v677
      %v679 = vpop.f32.mrf.mxu0
      %v680 = vadd.f32 %v381, %v679
      %v681 = vpop.f32.mrf.mxu0
      %v682 = vpop.f32.mrf.mxu0
      %683 = vdwg.mxu0
      %684 = vmatprep.subr.bf16.mxu0 0
      %685 = vmatpush1.bf16.msra.mxu0 0
      %686 = vmatprep.subr.bf16.mxu0 0
      %687 = vmatpush1.bf16.msra.mxu0 0
      %688 = vmatprep.subr.bf16.mxu0 0
      %689 = vmatpush1.bf16.msra.mxu0 0
      %690 = vmatprep.subr.bf16.mxu0 0
      %691 = vmatpush1.bf16.msra.mxu0 0
      %692 = vmatprep.subr.bf16.mxu0 %v505
      %693 = vmatpush1.bf16.msra.mxu0 %v504
      %694 = vmatprep.subr.bf16.mxu0 %v501
      %695 = vmatpush1.bf16.msra.mxu0 %v500
      %696 = vmatprep.subr.bf16.mxu0 %v497
      %697 = vmatpush1.bf16.msra.mxu0 %v496
      %698 = vmatprep.subr.bf16.mxu0 %v493
      %699 = vmatpush1.bf16.msra.mxu0 %v492
      %700 = vmatprep.subr.bf16.mxu0 0
      %701 = vmatpush2.bf16.msra.mxu0 0
      %702 = vmatprep.subr.bf16.mxu0 0
      %703 = vmatpush2.bf16.msra.mxu0 0
      %704 = vmatprep.subr.bf16.mxu0 0
      %705 = vmatpush2.bf16.msra.mxu0 0
      %706 = vmatprep.subr.bf16.mxu0 0
      %707 = vmatpush2.bf16.msra.mxu0 0
      %708 = vmatprep.subr.bf16.mxu0 0
      %709 = vmatpush2.bf16.msra.mxu0 0
      %710 = vmatprep.subr.bf16.mxu0 0
      %711 = vmatpush2.bf16.msra.mxu0 0
      %712 = vmatprep.subr.bf16.mxu0 0
      %713 = vmatpush2.bf16.msra.mxu0 0
      %714 = vmatprep.subr.bf16.mxu0 0
      %715 = vmatpush2.bf16.msra.mxu0 0
      %716 = vmatprep.mubr.bf16.mxu0 0
      %717 = vmatmul.mubr.bf16.gmra.mxu0 %v524
      %v718 = vpop.f32.mrf.mxu0
      %v719 = vadd.f32 %v385, %v718
      %v720 = vpop.f32.mrf.mxu0
      %v721 = vadd.f32 %v389, %v720
      %v722 = vpop.f32.mrf.mxu0
      %v723 = vadd.f32 %v385, %v722
      %v724 = vpop.f32.mrf.mxu0
      %v725 = vadd.f32 %v389, %v724
      %726 = vmatprep.mubr.bf16.mxu0 0
      %727 = vmatmul.mubr.bf16.gmra.mxu0 %v527
      %v728 = vpop.f32.mrf.mxu0
      %v729 = vadd.f32 %v385, %v728
      %v730 = vpop.f32.mrf.mxu0
      %v731 = vadd.f32 %v389, %v730
      %v732 = vpop.f32.mrf.mxu0
      %v733 = vadd.f32 %v385, %v732
      %v734 = vpop.f32.mrf.mxu0
      %v735 = vadd.f32 %v389, %v734
      %736 = vmatprep.mubr.bf16.mxu0 0
      %737 = vmatmul.mubr.bf16.gmra.mxu0 %v530
      %v738 = vpop.f32.mrf.mxu0
      %v739 = vadd.f32 %v385, %v738
      %v740 = vpop.f32.mrf.mxu0
      %v741 = vadd.f32 %v389, %v740
      %v742 = vpop.f32.mrf.mxu0
      %v743 = vadd.f32 %v385, %v742
      %v744 = vpop.f32.mrf.mxu0
      %v745 = vadd.f32 %v389, %v744
      %746 = vmatprep.mubr.bf16.mxu0 0
      %747 = vmatmul.mubr.bf16.gmra.mxu0 %v533
      %v748 = vpop.f32.mrf.mxu0
      %v749 = vadd.f32 %v385, %v748
      %v750 = vpop.f32.mrf.mxu0
      %v751 = vadd.f32 %v389, %v750
      %v752 = vpop.f32.mrf.mxu0
      %v753 = vadd.f32 %v385, %v752
      %v754 = vpop.f32.mrf.mxu0
      %v755 = vadd.f32 %v389, %v754
      %756 = vmatprep.mubr.bf16.mxu0 0
      %757 = vmatmul.mubr.bf16.gmra.mxu0 %v536
      %v758 = vpop.f32.mrf.mxu0
      %v759 = vadd.f32 %v385, %v758
      %v760 = vpop.f32.mrf.mxu0
      %v761 = vadd.f32 %v389, %v760
      %v762 = vpop.f32.mrf.mxu0
      %v763 = vadd.f32 %v385, %v762
      %v764 = vpop.f32.mrf.mxu0
      %v765 = vadd.f32 %v389, %v764
      %766 = vmatprep.mubr.bf16.mxu0 0
      %767 = vmatmul.mubr.bf16.gmra.mxu0 %v539
      %v768 = vpop.f32.mrf.mxu0
      %v769 = vadd.f32 %v385, %v768
      %v770 = vpop.f32.mrf.mxu0
      %v771 = vadd.f32 %v389, %v770
      %v772 = vpop.f32.mrf.mxu0
      %v773 = vadd.f32 %v385, %v772
      %v774 = vpop.f32.mrf.mxu0
      %v775 = vadd.f32 %v389, %v774
      %776 = vmatprep.mubr.bf16.mxu0 0
      %777 = vmatmul.mubr.bf16.gmra.mxu0 %v542
      %v778 = vpop.f32.mrf.mxu0
      %v779 = vadd.f32 %v385, %v778
      %v780 = vpop.f32.mrf.mxu0
      %v781 = vadd.f32 %v389, %v780
      %v782 = vpop.f32.mrf.mxu0
      %v783 = vadd.f32 %v385, %v782
      %v784 = vpop.f32.mrf.mxu0
      %v785 = vadd.f32 %v389, %v784
      %786 = vmatprep.mubr.bf16.mxu0 0
      %787 = vmatmul.mubr.bf16.gmra.mxu0 %v545
      %v788 = vpop.f32.mrf.mxu0
      %v789 = vadd.f32 %v385, %v788
      %v790 = vpop.f32.mrf.mxu0
      %v791 = vadd.f32 %v389, %v790
      %v792 = vpop.f32.mrf.mxu0
      %v793 = vadd.f32 %v385, %v792
      %v794 = vpop.f32.mrf.mxu0
      %v795 = vadd.f32 %v389, %v794
      %796 = vmatprep.mubr.bf16.mxu0 0
      %797 = vmatmul.mubr.bf16.gmra.mxu0 %v548
      %v798 = vpop.f32.mrf.mxu0
      %v799 = vadd.f32 %v385, %v798
      %v800 = vpop.f32.mrf.mxu0
      %v801 = vadd.f32 %v389, %v800
      %v802 = vpop.f32.mrf.mxu0
      %v803 = vadd.f32 %v385, %v802
      %v804 = vpop.f32.mrf.mxu0
      %v805 = vadd.f32 %v389, %v804
      %806 = vmatprep.mubr.bf16.mxu0 0
      %807 = vmatmul.mubr.bf16.gmra.mxu0 %v551
      %v808 = vpop.f32.mrf.mxu0
      %v809 = vadd.f32 %v385, %v808
      %v810 = vpop.f32.mrf.mxu0
      %v811 = vadd.f32 %v389, %v810
      %v812 = vpop.f32.mrf.mxu0
      %v813 = vpop.f32.mrf.mxu0
      %814 = vdwg.mxu0
      %v815 = vmax.f32 %v588, 0.0
      %v816 = vmax.f32 %v590, 0.0
      %v817 = vmax.f32 %v719, 0.0
      %v818 = vmax.f32 %v721, 0.0
      %v819 = vmax.f32 %v592, 0.0
      %v820 = vmax.f32 %v594, 0.0
      %v821 = vmax.f32 %v723, 0.0
      %v822 = vmax.f32 %v725, 0.0
      %v823 = vmax.f32 %v598, 0.0
      %v824 = vmax.f32 %v600, 0.0
      %v825 = vmax.f32 %v729, 0.0
      %v826 = vmax.f32 %v731, 0.0
      %v827 = vmax.f32 %v602, 0.0
      %v828 = vmax.f32 %v604, 0.0
      %v829 = vmax.f32 %v733, 0.0
      %v830 = vmax.f32 %v735, 0.0
      %v831 = vmax.f32 %v608, 0.0
      %v832 = vmax.f32 %v610, 0.0
      %v833 = vmax.f32 %v739, 0.0
      %v834 = vmax.f32 %v741, 0.0
      %v835 = vmax.f32 %v612, 0.0
      %v836 = vmax.f32 %v614, 0.0
      %v837 = vmax.f32 %v743, 0.0
      %v838 = vmax.f32 %v745, 0.0
      %v839 = vmax.f32 %v618, 0.0
      %v840 = vmax.f32 %v620, 0.0
      %v841 = vmax.f32 %v749, 0.0
      %v842 = vmax.f32 %v751, 0.0
      %v843 = vmax.f32 %v622, 0.0
      %v844 = vmax.f32 %v624, 0.0
      %v845 = vmax.f32 %v753, 0.0
      %v846 = vmax.f32 %v755, 0.0
      %v847 = vmax.f32 %v628, 0.0
      %v848 = vmax.f32 %v630, 0.0
      %v849 = vmax.f32 %v759, 0.0
      %v850 = vmax.f32 %v761, 0.0
      %v851 = vmax.f32 %v632, 0.0
      %v852 = vmax.f32 %v634, 0.0
      %v853 = vmax.f32 %v763, 0.0
      %v854 = vmax.f32 %v765, 0.0
      %v855 = vmax.f32 %v638, 0.0
      %v856 = vmax.f32 %v640, 0.0
      %v857 = vmax.f32 %v769, 0.0
      %v858 = vmax.f32 %v771, 0.0
      %v859 = vmax.f32 %v642, 0.0
      %v860 = vmax.f32 %v644, 0.0
      %v861 = vmax.f32 %v773, 0.0
      %v862 = vmax.f32 %v775, 0.0
      %v863 = vmax.f32 %v648, 0.0
      %v864 = vmax.f32 %v650, 0.0
      %v865 = vmax.f32 %v779, 0.0
      %v866 = vmax.f32 %v781, 0.0
      %v867 = vmax.f32 %v652, 0.0
      %v868 = vmax.f32 %v654, 0.0
      %v869 = vmax.f32 %v783, 0.0
      %v870 = vmax.f32 %v785, 0.0
      %v871 = vmax.f32 %v658, 0.0
      %v872 = vmax.f32 %v660, 0.0
      %v873 = vmax.f32 %v789, 0.0
      %v874 = vmax.f32 %v791, 0.0
      %v875 = vmax.f32 %v662, 0.0
      %v876 = vmax.f32 %v664, 0.0
      %v877 = vmax.f32 %v793, 0.0
      %v878 = vmax.f32 %v795, 0.0
      %v879 = vmax.f32 %v668, 0.0
      %v880 = vmax.f32 %v670, 0.0
      %v881 = vmax.f32 %v799, 0.0
      %v882 = vmax.f32 %v801, 0.0
      %v883 = vmax.f32 %v672, 0.0
      %v884 = vmax.f32 %v674, 0.0
      %v885 = vmax.f32 %v803, 0.0
      %v886 = vmax.f32 %v805, 0.0
      %v887 = vmax.f32 %v678, 0.0
      %v888 = vmax.f32 %v680, 0.0
      %v889 = vmax.f32 %v809, 0.0
      %v890 = vmax.f32 %v811, 0.0
      %v891 = vpack.c.bf16 %v819, %v815
      %v892 = vpack.c.bf16 %v820, %v816
      %v893 = vpack.c.bf16 %v821, %v817
      %v894 = vpack.c.bf16 %v822, %v818
      %v895 = vpack.c.bf16 %v827, %v823
      %v896 = vpack.c.bf16 %v828, %v824
      %v897 = vpack.c.bf16 %v829, %v825
      %v898 = vpack.c.bf16 %v830, %v826
      %v899 = vpack.c.bf16 %v835, %v831
      %v900 = vpack.c.bf16 %v836, %v832
      %v901 = vpack.c.bf16 %v837, %v833
      %v902 = vpack.c.bf16 %v838, %v834
      %v903 = vpack.c.bf16 %v843, %v839
      %v904 = vpack.c.bf16 %v844, %v840
      %v905 = vpack.c.bf16 %v845, %v841
      %v906 = vpack.c.bf16 %v846, %v842
      %v907 = vpack.c.bf16 %v851, %v847
      %v908 = vpack.c.bf16 %v852, %v848
      %v909 = vpack.c.bf16 %v853, %v849
      %v910 = vpack.c.bf16 %v854, %v850
      %v911 = vpack.c.bf16 %v859, %v855
      %v912 = vpack.c.bf16 %v860, %v856
      %v913 = vpack.c.bf16 %v861, %v857
      %v914 = vpack.c.bf16 %v862, %v858
      %v915 = vpack.c.bf16 %v867, %v863
      %v916 = vpack.c.bf16 %v868, %v864
      %v917 = vpack.c.bf16 %v869, %v865
      %v918 = vpack.c.bf16 %v870, %v866
      %v919 = vpack.c.bf16 %v875, %v871
      %v920 = vpack.c.bf16 %v876, %v872
      %v921 = vpack.c.bf16 %v877, %v873
      %v922 = vpack.c.bf16 %v878, %v874
      %v923 = vpack.c.bf16 %v883, %v879
      %v924 = vpack.c.bf16 %v884, %v880
      %v925 = vpack.c.bf16 %v885, %v881
      %v926 = vpack.c.bf16 %v886, %v882
      %v927 = vpack.c.bf16 %v887, %v887
      %v928 = vpack.c.bf16 %v888, %v888
      %v929 = vpack.c.bf16 %v889, %v889
      %v930 = vpack.c.bf16 %v890, %v890
      %v931 = vld [vmem:[%s3] sm:$0xff]
      %v932 = vld [vmem:[%s3 + $0x8] sm:$0xff]
      %v933 = vld [vmem:[%s3 + $0x10] sm:$0xff]
      %v934 = vld [vmem:[%s3 + $0x18] sm:$0xff]
      %v935 = vld [vmem:[%s3 + $0x20] sm:$0xff]
      %v936 = vld [vmem:[%s3 + $0x28] sm:$0xff]
      %v937 = vld [vmem:[%s3 + $0x30] sm:$0xff]
      %v938 = vld [vmem:[%s3 + $0x38] sm:$0xff]
      %v939 = vld [vmem:[%s3 + $0x40] sm:$0xff]
      %v940 = vld [vmem:[%s3 + $0x48] sm:$0xff]
      %v941 = vld [vmem:[%s3 + $0x50] sm:$0xff]
      %v942 = vld [vmem:[%s3 + $0x58] sm:$0xff]
      %v943 = vld [vmem:[%s3 + $0x60] sm:$0xff]
      %v944 = vld [vmem:[%s3 + $0x68] sm:$0xff]
      %v945 = vld [vmem:[%s3 + $0x70] sm:$0xff]
      %v946 = vld [vmem:[%s3 + $0x78] sm:$0xff]
      %v947 = vld [vmem:[%s3 + $0x80] sm:$0xff]
      %v948 = vld [vmem:[%s3 + $0x88] sm:$0xff]
      %v949 = vld [vmem:[%s3 + $0x90] sm:$0xff]
      %v950 = vld [vmem:[%s3 + $0x98] sm:$0xff]
      %v951 = vld [vmem:[%s3 + $0xa0] sm:$0xff]
      %v952 = vld [vmem:[%s3 + $0xa8] sm:$0xff]
      %v953 = vld [vmem:[%s3 + $0xb0] sm:$0xff]
      %v954 = vld [vmem:[%s3 + $0xb8] sm:$0xff]
      %v955 = vld [vmem:[%s3 + $0xc0] sm:$0xff]
      %v956 = vld [vmem:[%s3 + $0xc8] sm:$0xff]
      %v957 = vld [vmem:[%s3 + $0xd0] sm:$0xff]
      %v958 = vld [vmem:[%s3 + $0xd8] sm:$0xff]
      %v959 = vld [vmem:[%s3 + $0xe0] sm:$0xff]
      %v960 = vld [vmem:[%s3 + $0xe8] sm:$0xff]
      %v961 = vld [vmem:[%s3 + $0xf0] sm:$0xff]
      %v962 = vld [vmem:[%s3 + $0xf8] sm:$0xff]
      %v963 = vld [vmem:[%s3 + $0x100] sm:$0xff]
      %v964 = vld [vmem:[%s3 + $0x108] sm:$0xff]
      %v965 = vld [vmem:[%s3 + $0x110] sm:$0xff]
      %v966 = vld [vmem:[%s3 + $0x118] sm:$0xff]
      %v967 = vld [vmem:[%s3 + $0x120] sm:$0xff]
      %v968 = vld [vmem:[%s3 + $0x128] sm:$0xff]
      %v969 = vld [vmem:[%s3 + $0x130] sm:$0xff]
      %v970 = vld [vmem:[%s3 + $0x138] sm:$0xff]
      %v971 = vld [vmem:[%s3 + $0x140] sm:$0xff]
      %v972 = vld [vmem:[%s3 + $0x148] sm:$0xff]
      %v973 = vld [vmem:[%s3 + $0x150] sm:$0xff]
      %v974 = vld [vmem:[%s3 + $0x158] sm:$0xff]
      %v975 = vld [vmem:[%s3 + $0x160] sm:$0xff]
      %v976 = vld [vmem:[%s3 + $0x168] sm:$0xff]
      %v977 = vld [vmem:[%s3 + $0x170] sm:$0xff]
      %v978 = vld [vmem:[%s3 + $0x178] sm:$0xff]
      %v979 = vld [vmem:[%s3 + $0x180] sm:$0xff]
      %v980 = vld [vmem:[%s3 + $0x188] sm:$0xff]
      %v981 = vld [vmem:[%s3 + $0x190] sm:$0xff]
      %v982 = vld [vmem:[%s3 + $0x198] sm:$0xff]
      %v983 = vld [vmem:[%s3 + $0x1a0] sm:$0xff]
      %v984 = vld [vmem:[%s3 + $0x1a8] sm:$0xff]
      %v985 = vld [vmem:[%s3 + $0x1b0] sm:$0xff]
      %v986 = vld [vmem:[%s3 + $0x1b8] sm:$0xff]
      %v987 = vld [vmem:[%s3 + $0x1c0] sm:$0xff]
      %v988 = vld [vmem:[%s3 + $0x1c8] sm:$0xff]
      %v989 = vld [vmem:[%s3 + $0x1d0] sm:$0xff]
      %v990 = vld [vmem:[%s3 + $0x1d8] sm:$0xff]
      %v991 = vld [vmem:[%s3 + $0x1e0] sm:$0xff]
      %v992 = vld [vmem:[%s3 + $0x1e8] sm:$0xff]
      %v993 = vld [vmem:[%s3 + $0x1f0] sm:$0xff]
      %v994 = vld [vmem:[%s3 + $0x1f8] sm:$0xff]
      %v995 = vld [vmem:[%s4] sm:$0x3]
      %v997 = vlaneseq
      %v998 = vshrl.u32 %v997, 7
      %v999 = vsub.s32 0, %v998
      %v1000 = vrot.slane %v995, %v999
      %v1001 = vlaneseq
      %v1002 = vshrl.u32 %v1001, 7
      %v1003 = vsub.s32 1, %v1002
      %v1004 = vrot.slane %v995, %v1003
      %v1071 = vunpack.c.l.b16 %v931
      %v1072 = vunpack.c.h.b16 %v931
      %v1073 = vunpack.c.l.b16 %v932
      %v1074 = vunpack.c.h.b16 %v932
      %v1075 = vunpack.c.l.b16 %v933
      %v1076 = vunpack.c.h.b16 %v933
      %v1077 = vunpack.c.l.b16 %v934
      %v1078 = vunpack.c.h.b16 %v934
      %v1079 = vunpack.c.l.b16 %v935
      %v1080 = vunpack.c.h.b16 %v935
      %v1081 = vunpack.c.l.b16 %v936
      %v1082 = vunpack.c.h.b16 %v936
      %v1083 = vunpack.c.l.b16 %v937
      %v1084 = vunpack.c.h.b16 %v937
      %v1085 = vunpack.c.l.b16 %v938
      %v1086 = vunpack.c.h.b16 %v938
      %v1087 = vunpack.c.l.b16 %v939
      %v1088 = vunpack.c.h.b16 %v939
      %v1089 = vunpack.c.l.b16 %v940
      %v1090 = vunpack.c.h.b16 %v940
      %v1091 = vunpack.c.l.b16 %v941
      %v1092 = vunpack.c.h.b16 %v941
      %v1093 = vunpack.c.l.b16 %v942
      %v1094 = vunpack.c.h.b16 %v942
      %v1095 = vunpack.c.l.b16 %v943
      %v1096 = vunpack.c.h.b16 %v943
      %v1097 = vunpack.c.l.b16 %v944
      %v1098 = vunpack.c.h.b16 %v944
      %v1099 = vunpack.c.l.b16 %v945
      %v1100 = vunpack.c.h.b16 %v945
      %v1101 = vunpack.c.l.b16 %v946
      %v1102 = vunpack.c.h.b16 %v946
      %v1103 = vunpack.c.l.b16 %v947
      %v1104 = vunpack.c.h.b16 %v947
      %v1105 = vunpack.c.l.b16 %v948
      %v1106 = vunpack.c.h.b16 %v948
      %v1107 = vunpack.c.l.b16 %v949
      %v1108 = vunpack.c.h.b16 %v949
      %v1109 = vunpack.c.l.b16 %v950
      %v1110 = vunpack.c.h.b16 %v950
      %v1111 = vunpack.c.l.b16 %v951
      %v1112 = vunpack.c.h.b16 %v951
      %v1113 = vunpack.c.l.b16 %v952
      %v1114 = vunpack.c.h.b16 %v952
      %v1115 = vunpack.c.l.b16 %v953
      %v1116 = vunpack.c.h.b16 %v953
      %v1117 = vunpack.c.l.b16 %v954
      %v1118 = vunpack.c.h.b16 %v954
      %v1119 = vunpack.c.l.b16 %v955
      %v1120 = vunpack.c.h.b16 %v955
      %v1121 = vunpack.c.l.b16 %v956
      %v1122 = vunpack.c.h.b16 %v956
      %v1123 = vunpack.c.l.b16 %v957
      %v1124 = vunpack.c.h.b16 %v957
      %v1125 = vunpack.c.l.b16 %v958
      %v1126 = vunpack.c.h.b16 %v958
      %v1127 = vunpack.c.l.b16 %v959
      %v1128 = vunpack.c.h.b16 %v959
      %v1129 = vunpack.c.l.b16 %v960
      %v1130 = vunpack.c.h.b16 %v960
      %v1131 = vunpack.c.l.b16 %v961
      %v1132 = vunpack.c.h.b16 %v961
      %v1133 = vunpack.c.l.b16 %v962
      %v1134 = vunpack.c.h.b16 %v962
      %v1135 = vunpack.c.l.b16 %v963
      %v1136 = vunpack.c.h.b16 %v963
      %v1137 = vunpack.c.l.b16 %v964
      %v1138 = vunpack.c.h.b16 %v964
      %v1139 = vunpack.c.l.b16 %v965
      %v1140 = vunpack.c.h.b16 %v965
      %v1141 = vunpack.c.l.b16 %v966
      %v1142 = vunpack.c.h.b16 %v966
      %v1143 = vunpack.c.l.b16 %v967
      %v1144 = vunpack.c.h.b16 %v967
      %v1145 = vunpack.c.l.b16 %v968
      %v1146 = vunpack.c.h.b16 %v968
      %v1147 = vunpack.c.l.b16 %v969
      %v1148 = vunpack.c.h.b16 %v969
      %v1149 = vunpack.c.l.b16 %v970
      %v1150 = vunpack.c.h.b16 %v970
      %v1151 = vunpack.c.l.b16 %v971
      %v1152 = vunpack.c.h.b16 %v971
      %v1153 = vunpack.c.l.b16 %v972
      %v1154 = vunpack.c.h.b16 %v972
      %v1155 = vunpack.c.l.b16 %v973
      %v1156 = vunpack.c.h.b16 %v973
      %v1157 = vunpack.c.l.b16 %v974
      %v1158 = vunpack.c.h.b16 %v974
      %v1159 = vunpack.c.l.b16 %v975
      %v1160 = vunpack.c.h.b16 %v975
      %v1161 = vunpack.c.l.b16 %v976
      %v1162 = vunpack.c.h.b16 %v976
      %v1163 = vunpack.c.l.b16 %v977
      %v1164 = vunpack.c.h.b16 %v977
      %v1165 = vunpack.c.l.b16 %v978
      %v1166 = vunpack.c.h.b16 %v978
      %v1167 = vunpack.c.l.b16 %v979
      %v1168 = vunpack.c.h.b16 %v979
      %v1169 = vunpack.c.l.b16 %v980
      %v1170 = vunpack.c.h.b16 %v980
      %v1171 = vunpack.c.l.b16 %v981
      %v1172 = vunpack.c.h.b16 %v981
      %v1173 = vunpack.c.l.b16 %v982
      %v1174 = vunpack.c.h.b16 %v982
      %v1175 = vunpack.c.l.b16 %v983
      %v1176 = vunpack.c.h.b16 %v983
      %v1177 = vunpack.c.l.b16 %v984
      %v1178 = vunpack.c.h.b16 %v984
      %v1179 = vunpack.c.l.b16 %v985
      %v1180 = vunpack.c.h.b16 %v985
      %v1181 = vunpack.c.l.b16 %v986
      %v1182 = vunpack.c.h.b16 %v986
      %v1183 = vunpack.c.l.b16 %v987
      %v1184 = vunpack.c.h.b16 %v987
      %v1185 = vunpack.c.l.b16 %v988
      %v1186 = vunpack.c.h.b16 %v988
      %v1187 = vunpack.c.l.b16 %v989
      %v1188 = vunpack.c.h.b16 %v989
      %v1189 = vunpack.c.l.b16 %v990
      %v1190 = vunpack.c.h.b16 %v990
      %v1191 = vunpack.c.l.b16 %v991
      %v1192 = vunpack.c.h.b16 %v991
      %v1193 = vunpack.c.l.b16 %v992
      %v1194 = vunpack.c.h.b16 %v992
      %v1195 = vunpack.c.l.b16 %v993
      %v1196 = vunpack.c.h.b16 %v993
      %v1197 = vunpack.c.l.b16 %v994
      %v1198 = vunpack.c.h.b16 %v994
      %v1199 = vpack.c.b16 %v1073, %v1071
      %v1200 = vpack.c.b16 %v1074, %v1072
      %v1201 = vpack.c.b16 %v1077, %v1075
      %v1202 = vpack.c.b16 %v1078, %v1076
      %v1203 = vpack.c.b16 %v1081, %v1079
      %v1204 = vpack.c.b16 %v1082, %v1080
      %v1205 = vpack.c.b16 %v1085, %v1083
      %v1206 = vpack.c.b16 %v1086, %v1084
      %v1207 = vpack.c.b16 %v1089, %v1087
      %v1208 = vpack.c.b16 %v1090, %v1088
      %v1209 = vpack.c.b16 %v1093, %v1091
      %v1210 = vpack.c.b16 %v1094, %v1092
      %v1211 = vpack.c.b16 %v1097, %v1095
      %v1212 = vpack.c.b16 %v1098, %v1096
      %v1213 = vpack.c.b16 %v1101, %v1099
      %v1214 = vpack.c.b16 %v1102, %v1100
      %v1215 = vpack.c.b16 %v1105, %v1103
      %v1216 = vpack.c.b16 %v1106, %v1104
      %v1217 = vpack.c.b16 %v1109, %v1107
      %v1218 = vpack.c.b16 %v1110, %v1108
      %v1219 = vpack.c.b16 %v1113, %v1111
      %v1220 = vpack.c.b16 %v1114, %v1112
      %v1221 = vpack.c.b16 %v1117, %v1115
      %v1222 = vpack.c.b16 %v1118, %v1116
      %v1223 = vpack.c.b16 %v1121, %v1119
      %v1224 = vpack.c.b16 %v1122, %v1120
      %v1225 = vpack.c.b16 %v1125, %v1123
      %v1226 = vpack.c.b16 %v1126, %v1124
      %v1227 = vpack.c.b16 %v1129, %v1127
      %v1228 = vpack.c.b16 %v1130, %v1128
      %v1229 = vpack.c.b16 %v1133, %v1131
      %v1230 = vpack.c.b16 %v1134, %v1132
      %v1231 = vpack.c.b16 %v1137, %v1135
      %v1232 = vpack.c.b16 %v1138, %v1136
      %v1233 = vpack.c.b16 %v1141, %v1139
      %v1234 = vpack.c.b16 %v1142, %v1140
      %v1235 = vpack.c.b16 %v1145, %v1143
      %v1236 = vpack.c.b16 %v1146, %v1144
      %v1237 = vpack.c.b16 %v1149, %v1147
      %v1238 = vpack.c.b16 %v1150, %v1148
      %v1239 = vpack.c.b16 %v1153, %v1151
      %v1240 = vpack.c.b16 %v1154, %v1152
      %v1241 = vpack.c.b16 %v1157, %v1155
      %v1242 = vpack.c.b16 %v1158, %v1156
      %v1243 = vpack.c.b16 %v1161, %v1159
      %v1244 = vpack.c.b16 %v1162, %v1160
      %v1245 = vpack.c.b16 %v1165, %v1163
      %v1246 = vpack.c.b16 %v1166, %v1164
      %v1247 = vpack.c.b16 %v1169, %v1167
      %v1248 = vpack.c.b16 %v1170, %v1168
      %v1249 = vpack.c.b16 %v1173, %v1171
      %v1250 = vpack.c.b16 %v1174, %v1172
      %v1251 = vpack.c.b16 %v1177, %v1175
      %v1252 = vpack.c.b16 %v1178, %v1176
      %v1253 = vpack.c.b16 %v1181, %v1179
      %v1254 = vpack.c.b16 %v1182, %v1180
      %v1255 = vpack.c.b16 %v1185, %v1183
      %v1256 = vpack.c.b16 %v1186, %v1184
      %v1257 = vpack.c.b16 %v1189, %v1187
      %v1258 = vpack.c.b16 %v1190, %v1188
      %v1259 = vpack.c.b16 %v1193, %v1191
      %v1260 = vpack.c.b16 %v1194, %v1192
      %v1261 = vpack.c.b16 %v1197, %v1195
      %v1262 = vpack.c.b16 %v1198, %v1196
      %1327 = vmatprep.subr.bf16.mxu0 %v1214
      %1328 = vmatpush1.bf16.msra.mxu0 %v1213
      %1329 = vmatprep.subr.bf16.mxu0 %v1212
      %1330 = vmatpush1.bf16.msra.mxu0 %v1211
      %1331 = vmatprep.subr.bf16.mxu0 %v1210
      %1332 = vmatpush1.bf16.msra.mxu0 %v1209
      %1333 = vmatprep.subr.bf16.mxu0 %v1208
      %1334 = vmatpush1.bf16.msra.mxu0 %v1207
      %1335 = vmatprep.subr.bf16.mxu0 %v1206
      %1336 = vmatpush1.bf16.msra.mxu0 %v1205
      %1337 = vmatprep.subr.bf16.mxu0 %v1204
      %1338 = vmatpush1.bf16.msra.mxu0 %v1203
      %1339 = vmatprep.subr.bf16.mxu0 %v1202
      %1340 = vmatpush1.bf16.msra.mxu0 %v1201
      %1341 = vmatprep.subr.bf16.mxu0 %v1200
      %1342 = vmatpush1.bf16.msra.mxu0 %v1199
      %1343 = vmatprep.subr.bf16.mxu0 %v1230
      %1344 = vmatpush2.bf16.msra.mxu0 %v1229
      %1345 = vmatprep.subr.bf16.mxu0 %v1228
      %1346 = vmatpush2.bf16.msra.mxu0 %v1227
      %1347 = vmatprep.subr.bf16.mxu0 %v1226
      %1348 = vmatpush2.bf16.msra.mxu0 %v1225
      %1349 = vmatprep.subr.bf16.mxu0 %v1224
      %1350 = vmatpush2.bf16.msra.mxu0 %v1223
      %1351 = vmatprep.subr.bf16.mxu0 %v1222
      %1352 = vmatpush2.bf16.msra.mxu0 %v1221
      %1353 = vmatprep.subr.bf16.mxu0 %v1220
      %1354 = vmatpush2.bf16.msra.mxu0 %v1219
      %1355 = vmatprep.subr.bf16.mxu0 %v1218
      %1356 = vmatpush2.bf16.msra.mxu0 %v1217
      %1357 = vmatprep.subr.bf16.mxu0 %v1216
      %1358 = vmatpush2.bf16.msra.mxu0 %v1215
      %1359 = vmatprep.mubr.bf16.mxu0 %v892
      %1360 = vmatmul.mubr.bf16.gmra.mxu0 %v891
      %v1361 = vpop.f32.mrf.mxu0
      %v1362 = vadd.f32 %v1000, %v1361
      %v1363 = vpop.f32.mrf.mxu0
      %v1364 = vadd.f32 %v1004, %v1363
      %v1365 = vpop.f32.mrf.mxu0
      %v1366 = vadd.f32 %v1000, %v1365
      %v1367 = vpop.f32.mrf.mxu0
      %v1368 = vadd.f32 %v1004, %v1367
      %1369 = vmatprep.mubr.bf16.mxu0 %v896
      %1370 = vmatmul.mubr.bf16.gmra.mxu0 %v895
      %v1371 = vpop.f32.mrf.mxu0
      %v1372 = vadd.f32 %v1000, %v1371
      %v1373 = vpop.f32.mrf.mxu0
      %v1374 = vadd.f32 %v1004, %v1373
      %v1375 = vpop.f32.mrf.mxu0
      %v1376 = vadd.f32 %v1000, %v1375
      %v1377 = vpop.f32.mrf.mxu0
      %v1378 = vadd.f32 %v1004, %v1377
      %1379 = vmatprep.mubr.bf16.mxu0 %v900
      %1380 = vmatmul.mubr.bf16.gmra.mxu0 %v899
      %v1381 = vpop.f32.mrf.mxu0
      %v1382 = vadd.f32 %v1000, %v1381
      %v1383 = vpop.f32.mrf.mxu0
      %v1384 = vadd.f32 %v1004, %v1383
      %v1385 = vpop.f32.mrf.mxu0
      %v1386 = vadd.f32 %v1000, %v1385
      %v1387 = vpop.f32.mrf.mxu0
      %v1388 = vadd.f32 %v1004, %v1387
      %1389 = vmatprep.mubr.bf16.mxu0 %v904
      %1390 = vmatmul.mubr.bf16.gmra.mxu0 %v903
      %v1391 = vpop.f32.mrf.mxu0
      %v1392 = vadd.f32 %v1000, %v1391
      %v1393 = vpop.f32.mrf.mxu0
      %v1394 = vadd.f32 %v1004, %v1393
      %v1395 = vpop.f32.mrf.mxu0
      %v1396 = vadd.f32 %v1000, %v1395
      %v1397 = vpop.f32.mrf.mxu0
      %v1398 = vadd.f32 %v1004, %v1397
      %1399 = vmatprep.mubr.bf16.mxu0 %v908
      %1400 = vmatmul.mubr.bf16.gmra.mxu0 %v907
      %v1401 = vpop.f32.mrf.mxu0
      %v1402 = vadd.f32 %v1000, %v1401
      %v1403 = vpop.f32.mrf.mxu0
      %v1404 = vadd.f32 %v1004, %v1403
      %v1405 = vpop.f32.mrf.mxu0
      %v1406 = vadd.f32 %v1000, %v1405
      %v1407 = vpop.f32.mrf.mxu0
      %v1408 = vadd.f32 %v1004, %v1407
      %1409 = vmatprep.mubr.bf16.mxu0 %v912
      %1410 = vmatmul.mubr.bf16.gmra.mxu0 %v911
      %v1411 = vpop.f32.mrf.mxu0
      %v1412 = vadd.f32 %v1000, %v1411
      %v1413 = vpop.f32.mrf.mxu0
      %v1414 = vadd.f32 %v1004, %v1413
      %v1415 = vpop.f32.mrf.mxu0
      %v1416 = vadd.f32 %v1000, %v1415
      %v1417 = vpop.f32.mrf.mxu0
      %v1418 = vadd.f32 %v1004, %v1417
      %1419 = vmatprep.mubr.bf16.mxu0 %v916
      %1420 = vmatmul.mubr.bf16.gmra.mxu0 %v915
      %v1421 = vpop.f32.mrf.mxu0
      %v1422 = vadd.f32 %v1000, %v1421
      %v1423 = vpop.f32.mrf.mxu0
      %v1424 = vadd.f32 %v1004, %v1423
      %v1425 = vpop.f32.mrf.mxu0
      %v1426 = vadd.f32 %v1000, %v1425
      %v1427 = vpop.f32.mrf.mxu0
      %v1428 = vadd.f32 %v1004, %v1427
      %1429 = vmatprep.mubr.bf16.mxu0 %v920
      %1430 = vmatmul.mubr.bf16.gmra.mxu0 %v919
      %v1431 = vpop.f32.mrf.mxu0
      %v1432 = vadd.f32 %v1000, %v1431
      %v1433 = vpop.f32.mrf.mxu0
      %v1434 = vadd.f32 %v1004, %v1433
      %v1435 = vpop.f32.mrf.mxu0
      %v1436 = vadd.f32 %v1000, %v1435
      %v1437 = vpop.f32.mrf.mxu0
      %v1438 = vadd.f32 %v1004, %v1437
      %1439 = vmatprep.mubr.bf16.mxu0 %v924
      %1440 = vmatmul.mubr.bf16.gmra.mxu0 %v923
      %v1441 = vpop.f32.mrf.mxu0
      %v1442 = vadd.f32 %v1000, %v1441
      %v1443 = vpop.f32.mrf.mxu0
      %v1444 = vadd.f32 %v1004, %v1443
      %v1445 = vpop.f32.mrf.mxu0
      %v1446 = vadd.f32 %v1000, %v1445
      %v1447 = vpop.f32.mrf.mxu0
      %v1448 = vadd.f32 %v1004, %v1447
      %1449 = vmatprep.mubr.bf16.mxu0 %v928
      %1450 = vmatmul.mubr.bf16.gmra.mxu0 %v927
      %v1451 = vpop.f32.mrf.mxu0
      %v1452 = vadd.f32 %v1000, %v1451
      %v1453 = vpop.f32.mrf.mxu0
      %v1454 = vadd.f32 %v1004, %v1453
      %v1455 = vpop.f32.mrf.mxu0
      %v1456 = vpop.f32.mrf.mxu0
      %1457 = vdwg.mxu0
      %1458 = vmatprep.subr.bf16.mxu0 %v1246
      %1459 = vmatpush1.bf16.msra.mxu0 %v1245
      %1460 = vmatprep.subr.bf16.mxu0 %v1244
      %1461 = vmatpush1.bf16.msra.mxu0 %v1243
      %1462 = vmatprep.subr.bf16.mxu0 %v1242
      %1463 = vmatpush1.bf16.msra.mxu0 %v1241
      %1464 = vmatprep.subr.bf16.mxu0 %v1240
      %1465 = vmatpush1.bf16.msra.mxu0 %v1239
      %1466 = vmatprep.subr.bf16.mxu0 %v1238
      %1467 = vmatpush1.bf16.msra.mxu0 %v1237
      %1468 = vmatprep.subr.bf16.mxu0 %v1236
      %1469 = vmatpush1.bf16.msra.mxu0 %v1235
      %1470 = vmatprep.subr.bf16.mxu0 %v1234
      %1471 = vmatpush1.bf16.msra.mxu0 %v1233
      %1472 = vmatprep.subr.bf16.mxu0 %v1232
      %1473 = vmatpush1.bf16.msra.mxu0 %v1231
      %1474 = vmatprep.subr.bf16.mxu0 %v1262
      %1475 = vmatpush2.bf16.msra.mxu0 %v1261
      %1476 = vmatprep.subr.bf16.mxu0 %v1260
      %1477 = vmatpush2.bf16.msra.mxu0 %v1259
      %1478 = vmatprep.subr.bf16.mxu0 %v1258
      %1479 = vmatpush2.bf16.msra.mxu0 %v1257
      %1480 = vmatprep.subr.bf16.mxu0 %v1256
      %1481 = vmatpush2.bf16.msra.mxu0 %v1255
      %1482 = vmatprep.subr.bf16.mxu0 %v1254
      %1483 = vmatpush2.bf16.msra.mxu0 %v1253
      %1484 = vmatprep.subr.bf16.mxu0 %v1252
      %1485 = vmatpush2.bf16.msra.mxu0 %v1251
      %1486 = vmatprep.subr.bf16.mxu0 %v1250
      %1487 = vmatpush2.bf16.msra.mxu0 %v1249
      %1488 = vmatprep.subr.bf16.mxu0 %v1248
      %1489 = vmatpush2.bf16.msra.mxu0 %v1247
      %1490 = vmatprep.mubr.bf16.mxu0 %v894
      %1491 = vmatmul.mubr.bf16.gmra.mxu0 %v893
      %v1492 = vpop.f32.mrf.mxu0
      %v1493 = vadd.f32 %v1362, %v1492
      %v1494 = vpop.f32.mrf.mxu0
      %v1495 = vadd.f32 %v1364, %v1494
      %v1496 = vpop.f32.mrf.mxu0
      %v1497 = vadd.f32 %v1366, %v1496
      %v1498 = vpop.f32.mrf.mxu0
      %v1499 = vadd.f32 %v1368, %v1498
      %1500 = vmatprep.mubr.bf16.mxu0 %v898
      %1501 = vmatmul.mubr.bf16.gmra.mxu0 %v897
      %v1502 = vpop.f32.mrf.mxu0
      %v1503 = vadd.f32 %v1372, %v1502
      %v1504 = vpop.f32.mrf.mxu0
      %v1505 = vadd.f32 %v1374, %v1504
      %v1506 = vpop.f32.mrf.mxu0
      %v1507 = vadd.f32 %v1376, %v1506
      %v1508 = vpop.f32.mrf.mxu0
      %v1509 = vadd.f32 %v1378, %v1508
      %1510 = vmatprep.mubr.bf16.mxu0 %v902
      %1511 = vmatmul.mubr.bf16.gmra.mxu0 %v901
      %v1512 = vpop.f32.mrf.mxu0
      %v1513 = vadd.f32 %v1382, %v1512
      %v1514 = vpop.f32.mrf.mxu0
      %v1515 = vadd.f32 %v1384, %v1514
      %v1516 = vpop.f32.mrf.mxu0
      %v1517 = vadd.f32 %v1386, %v1516
      %v1518 = vpop.f32.mrf.mxu0
      %v1519 = vadd.f32 %v1388, %v1518
      %1520 = vmatprep.mubr.bf16.mxu0 %v906
      %1521 = vmatmul.mubr.bf16.gmra.mxu0 %v905
      %v1522 = vpop.f32.mrf.mxu0
      %v1523 = vadd.f32 %v1392, %v1522
      %v1524 = vpop.f32.mrf.mxu0
      %v1525 = vadd.f32 %v1394, %v1524
      %v1526 = vpop.f32.mrf.mxu0
      %v1527 = vadd.f32 %v1396, %v1526
      %v1528 = vpop.f32.mrf.mxu0
      %v1529 = vadd.f32 %v1398, %v1528
      %1530 = vmatprep.mubr.bf16.mxu0 %v910
      %1531 = vmatmul.mubr.bf16.gmra.mxu0 %v909
      %v1532 = vpop.f32.mrf.mxu0
      %v1533 = vadd.f32 %v1402, %v1532
      %v1534 = vpop.f32.mrf.mxu0
      %v1535 = vadd.f32 %v1404, %v1534
      %v1536 = vpop.f32.mrf.mxu0
      %v1537 = vadd.f32 %v1406, %v1536
      %v1538 = vpop.f32.mrf.mxu0
      %v1539 = vadd.f32 %v1408, %v1538
      %1540 = vmatprep.mubr.bf16.mxu0 %v914
      %1541 = vmatmul.mubr.bf16.gmra.mxu0 %v913
      %v1542 = vpop.f32.mrf.mxu0
      %v1543 = vadd.f32 %v1412, %v1542
      %v1544 = vpop.f32.mrf.mxu0
      %v1545 = vadd.f32 %v1414, %v1544
      %v1546 = vpop.f32.mrf.mxu0
      %v1547 = vadd.f32 %v1416, %v1546
      %v1548 = vpop.f32.mrf.mxu0
      %v1549 = vadd.f32 %v1418, %v1548
      %1550 = vmatprep.mubr.bf16.mxu0 %v918
      %1551 = vmatmul.mubr.bf16.gmra.mxu0 %v917
      %v1552 = vpop.f32.mrf.mxu0
      %v1553 = vadd.f32 %v1422, %v1552
      %v1554 = vpop.f32.mrf.mxu0
      %v1555 = vadd.f32 %v1424, %v1554
      %v1556 = vpop.f32.mrf.mxu0
      %v1557 = vadd.f32 %v1426, %v1556
      %v1558 = vpop.f32.mrf.mxu0
      %v1559 = vadd.f32 %v1428, %v1558
      %1560 = vmatprep.mubr.bf16.mxu0 %v922
      %1561 = vmatmul.mubr.bf16.gmra.mxu0 %v921
      %v1562 = vpop.f32.mrf.mxu0
      %v1563 = vadd.f32 %v1432, %v1562
      %v1564 = vpop.f32.mrf.mxu0
      %v1565 = vadd.f32 %v1434, %v1564
      %v1566 = vpop.f32.mrf.mxu0
      %v1567 = vadd.f32 %v1436, %v1566
      %v1568 = vpop.f32.mrf.mxu0
      %v1569 = vadd.f32 %v1438, %v1568
      %1570 = vmatprep.mubr.bf16.mxu0 %v926
      %1571 = vmatmul.mubr.bf16.gmra.mxu0 %v925
      %v1572 = vpop.f32.mrf.mxu0
      %v1573 = vadd.f32 %v1442, %v1572
      %v1574 = vpop.f32.mrf.mxu0
      %v1575 = vadd.f32 %v1444, %v1574
      %v1576 = vpop.f32.mrf.mxu0
      %v1577 = vadd.f32 %v1446, %v1576
      %v1578 = vpop.f32.mrf.mxu0
      %v1579 = vadd.f32 %v1448, %v1578
      %1580 = vmatprep.mubr.bf16.mxu0 %v930
      %1581 = vmatmul.mubr.bf16.gmra.mxu0 %v929
      %v1582 = vpop.f32.mrf.mxu0
      %v1583 = vadd.f32 %v1452, %v1582
      %v1584 = vpop.f32.mrf.mxu0
      %v1585 = vadd.f32 %v1454, %v1584
      %v1586 = vpop.f32.mrf.mxu0
      %v1587 = vpop.f32.mrf.mxu0
      %1588 = vdwg.mxu0
      %v1589 = vmax.f32 %v1493, 0.0
      %v1590 = vmax.f32 %v1495, 0.0
      %v1591 = vmax.f32 %v1497, 0.0
      %v1592 = vmax.f32 %v1499, 0.0
      %v1593 = vmax.f32 %v1503, 0.0
      %v1594 = vmax.f32 %v1505, 0.0
      %v1595 = vmax.f32 %v1507, 0.0
      %v1596 = vmax.f32 %v1509, 0.0
      %v1597 = vmax.f32 %v1513, 0.0
      %v1598 = vmax.f32 %v1515, 0.0
      %v1599 = vmax.f32 %v1517, 0.0
      %v1600 = vmax.f32 %v1519, 0.0
      %v1601 = vmax.f32 %v1523, 0.0
      %v1602 = vmax.f32 %v1525, 0.0
      %v1603 = vmax.f32 %v1527, 0.0
      %v1604 = vmax.f32 %v1529, 0.0
      %v1605 = vmax.f32 %v1533, 0.0
      %v1606 = vmax.f32 %v1535, 0.0
      %v1607 = vmax.f32 %v1537, 0.0
      %v1608 = vmax.f32 %v1539, 0.0
      %v1609 = vmax.f32 %v1543, 0.0
      %v1610 = vmax.f32 %v1545, 0.0
      %v1611 = vmax.f32 %v1547, 0.0
      %v1612 = vmax.f32 %v1549, 0.0
      %v1613 = vmax.f32 %v1553, 0.0
      %v1614 = vmax.f32 %v1555, 0.0
      %v1615 = vmax.f32 %v1557, 0.0
      %v1616 = vmax.f32 %v1559, 0.0
      %v1617 = vmax.f32 %v1563, 0.0
      %v1618 = vmax.f32 %v1565, 0.0
      %v1619 = vmax.f32 %v1567, 0.0
      %v1620 = vmax.f32 %v1569, 0.0
      %v1621 = vmax.f32 %v1573, 0.0
      %v1622 = vmax.f32 %v1575, 0.0
      %v1623 = vmax.f32 %v1577, 0.0
      %v1624 = vmax.f32 %v1579, 0.0
      %v1625 = vmax.f32 %v1583, 0.0
      %v1626 = vmax.f32 %v1585, 0.0
      %v1627 = vpack.c.bf16 %v1591, %v1589
      %v1628 = vpack.c.bf16 %v1592, %v1590
      %v1629 = vpack.c.bf16 %v1595, %v1593
      %v1630 = vpack.c.bf16 %v1596, %v1594
      %v1631 = vpack.c.bf16 %v1599, %v1597
      %v1632 = vpack.c.bf16 %v1600, %v1598
      %v1633 = vpack.c.bf16 %v1603, %v1601
      %v1634 = vpack.c.bf16 %v1604, %v1602
      %v1635 = vpack.c.bf16 %v1607, %v1605
      %v1636 = vpack.c.bf16 %v1608, %v1606
      %v1637 = vpack.c.bf16 %v1611, %v1609
      %v1638 = vpack.c.bf16 %v1612, %v1610
      %v1639 = vpack.c.bf16 %v1615, %v1613
      %v1640 = vpack.c.bf16 %v1616, %v1614
      %v1641 = vpack.c.bf16 %v1619, %v1617
      %v1642 = vpack.c.bf16 %v1620, %v1618
      %v1643 = vpack.c.bf16 %v1623, %v1621
      %v1644 = vpack.c.bf16 %v1624, %v1622
      %v1645 = vpack.c.bf16 %v1625, %v1625
      %v1646 = vpack.c.bf16 %v1626, %v1626
      %v1647 = vld [vmem:[%s5] sm:$0xf]
      %v1648 = vld [vmem:[%s5 + $0x4] sm:$0xf]
      %v1649 = vld [vmem:[%s5 + $0x8] sm:$0xf]
      %v1650 = vld [vmem:[%s5 + $0xc] sm:$0xf]
      %v1651 = vld [vmem:[%s5 + $0x10] sm:$0xf]
      %v1652 = vld [vmem:[%s5 + $0x14] sm:$0xf]
      %v1653 = vld [vmem:[%s5 + $0x18] sm:$0xf]
      %v1654 = vld [vmem:[%s5 + $0x1c] sm:$0xf]
      %v1655 = vld [vmem:[%s5 + $0x20] sm:$0xf]
      %v1656 = vld [vmem:[%s5 + $0x24] sm:$0xf]
      %v1657 = vld [vmem:[%s5 + $0x28] sm:$0xf]
      %v1658 = vld [vmem:[%s5 + $0x2c] sm:$0xf]
      %v1659 = vld [vmem:[%s5 + $0x30] sm:$0xf]
      %v1660 = vld [vmem:[%s5 + $0x34] sm:$0xf]
      %v1661 = vld [vmem:[%s5 + $0x38] sm:$0xf]
      %v1662 = vld [vmem:[%s5 + $0x3c] sm:$0xf]
      %v1663 = vld [vmem:[%s5 + $0x40] sm:$0xf]
      %v1664 = vld [vmem:[%s5 + $0x44] sm:$0xf]
      %v1665 = vld [vmem:[%s5 + $0x48] sm:$0xf]
      %v1666 = vld [vmem:[%s5 + $0x4c] sm:$0xf]
      %v1667 = vld [vmem:[%s5 + $0x50] sm:$0xf]
      %v1668 = vld [vmem:[%s5 + $0x54] sm:$0xf]
      %v1669 = vld [vmem:[%s5 + $0x58] sm:$0xf]
      %v1670 = vld [vmem:[%s5 + $0x5c] sm:$0xf]
      %v1671 = vld [vmem:[%s5 + $0x60] sm:$0xf]
      %v1672 = vld [vmem:[%s5 + $0x64] sm:$0xf]
      %v1673 = vld [vmem:[%s5 + $0x68] sm:$0xf]
      %v1674 = vld [vmem:[%s5 + $0x6c] sm:$0xf]
      %v1675 = vld [vmem:[%s5 + $0x70] sm:$0xf]
      %v1676 = vld [vmem:[%s5 + $0x74] sm:$0xf]
      %v1677 = vld [vmem:[%s5 + $0x78] sm:$0xf]
      %v1678 = vld [vmem:[%s5 + $0x7c] sm:$0xf]
      %v1679 = vld [vmem:[%s6] sm:$0x1]
      %v1681 = vlaneseq
      %v1682 = vshrl.u32 %v1681, 7
      %v1683 = vsub.s32 0, %v1682
      %v1684 = vrot.slane %v1679, %v1683
      %v1718 = vunpack.c.l.b16 %v1647
      %v1719 = vunpack.c.l.b16 %v1648
      %v1720 = vunpack.c.l.b16 %v1649
      %v1721 = vunpack.c.l.b16 %v1650
      %v1722 = vunpack.c.l.b16 %v1651
      %v1723 = vunpack.c.l.b16 %v1652
      %v1724 = vunpack.c.l.b16 %v1653
      %v1725 = vunpack.c.l.b16 %v1654
      %v1726 = vunpack.c.l.b16 %v1655
      %v1727 = vunpack.c.l.b16 %v1656
      %v1728 = vunpack.c.l.b16 %v1657
      %v1729 = vunpack.c.l.b16 %v1658
      %v1730 = vunpack.c.l.b16 %v1659
      %v1731 = vunpack.c.l.b16 %v1660
      %v1732 = vunpack.c.l.b16 %v1661
      %v1733 = vunpack.c.l.b16 %v1662
      %v1734 = vunpack.c.l.b16 %v1663
      %v1735 = vunpack.c.l.b16 %v1664
      %v1736 = vunpack.c.l.b16 %v1665
      %v1737 = vunpack.c.l.b16 %v1666
      %v1738 = vunpack.c.l.b16 %v1667
      %v1739 = vunpack.c.l.b16 %v1668
      %v1740 = vunpack.c.l.b16 %v1669
      %v1741 = vunpack.c.l.b16 %v1670
      %v1742 = vunpack.c.l.b16 %v1671
      %v1743 = vunpack.c.l.b16 %v1672
      %v1744 = vunpack.c.l.b16 %v1673
      %v1745 = vunpack.c.l.b16 %v1674
      %v1746 = vunpack.c.l.b16 %v1675
      %v1747 = vunpack.c.l.b16 %v1676
      %v1748 = vunpack.c.l.b16 %v1677
      %v1749 = vunpack.c.l.b16 %v1678
      %v1750 = vpack.c.b16 %v1719, %v1718
      %v1751 = vpack.c.b16 %v1721, %v1720
      %v1752 = vpack.c.b16 %v1723, %v1722
      %v1753 = vpack.c.b16 %v1725, %v1724
      %v1754 = vpack.c.b16 %v1727, %v1726
      %v1755 = vpack.c.b16 %v1729, %v1728
      %v1756 = vpack.c.b16 %v1731, %v1730
      %v1757 = vpack.c.b16 %v1733, %v1732
      %v1758 = vpack.c.b16 %v1735, %v1734
      %v1759 = vpack.c.b16 %v1737, %v1736
      %v1760 = vpack.c.b16 %v1739, %v1738
      %v1761 = vpack.c.b16 %v1741, %v1740
      %v1762 = vpack.c.b16 %v1743, %v1742
      %v1763 = vpack.c.b16 %v1745, %v1744
      %v1764 = vpack.c.b16 %v1747, %v1746
      %v1765 = vpack.c.b16 %v1749, %v1748
      %1782 = vmatprep.subr.bf16.mxu0 0
      %1783 = vmatpush1.bf16.msra.mxu0 %v1757
      %1784 = vmatprep.subr.bf16.mxu0 0
      %1785 = vmatpush1.bf16.msra.mxu0 %v1756
      %1786 = vmatprep.subr.bf16.mxu0 0
      %1787 = vmatpush1.bf16.msra.mxu0 %v1755
      %1788 = vmatprep.subr.bf16.mxu0 0
      %1789 = vmatpush1.bf16.msra.mxu0 %v1754
      %1790 = vmatprep.subr.bf16.mxu0 0
      %1791 = vmatpush1.bf16.msra.mxu0 %v1753
      %1792 = vmatprep.subr.bf16.mxu0 0
      %1793 = vmatpush1.bf16.msra.mxu0 %v1752
      %1794 = vmatprep.subr.bf16.mxu0 0
      %1795 = vmatpush1.bf16.msra.mxu0 %v1751
      %1796 = vmatprep.subr.bf16.mxu0 0
      %1797 = vmatpush1.bf16.msra.mxu0 %v1750
      %1798 = vmatprep.subr.bf16.mxu0 0
      %1799 = vmatpush2.bf16.msra.mxu0 %v1765
      %1800 = vmatprep.subr.bf16.mxu0 0
      %1801 = vmatpush2.bf16.msra.mxu0 %v1764
      %1802 = vmatprep.subr.bf16.mxu0 0
      %1803 = vmatpush2.bf16.msra.mxu0 %v1763
      %1804 = vmatprep.subr.bf16.mxu0 0
      %1805 = vmatpush2.bf16.msra.mxu0 %v1762
      %1806 = vmatprep.subr.bf16.mxu0 0
      %1807 = vmatpush2.bf16.msra.mxu0 %v1761
      %1808 = vmatprep.subr.bf16.mxu0 0
      %1809 = vmatpush2.bf16.msra.mxu0 %v1760
      %1810 = vmatprep.subr.bf16.mxu0 0
      %1811 = vmatpush2.bf16.msra.mxu0 %v1759
      %1812 = vmatprep.subr.bf16.mxu0 0
      %1813 = vmatpush2.bf16.msra.mxu0 %v1758
      %1814 = vmatprep.mubr.bf16.mxu0 %v1628
      %1815 = vmatmul.mubr.bf16.gmra.mxu0 %v1627
      %v1816 = vpop.f32.mrf.mxu0
      %v1817 = vadd.f32 %v1684, %v1816
      %v1818 = vpop.f32.mrf.mxu0
      %v1819 = vpop.f32.mrf.mxu0
      %v1820 = vadd.f32 %v1684, %v1819
      %v1821 = vpop.f32.mrf.mxu0
      %1822 = vmatprep.mubr.bf16.mxu0 %v1630
      %1823 = vmatmul.mubr.bf16.gmra.mxu0 %v1629
      %v1824 = vpop.f32.mrf.mxu0
      %v1825 = vadd.f32 %v1684, %v1824
      %v1826 = vpop.f32.mrf.mxu0
      %v1827 = vpop.f32.mrf.mxu0
      %v1828 = vadd.f32 %v1684, %v1827
      %v1829 = vpop.f32.mrf.mxu0
      %1830 = vmatprep.mubr.bf16.mxu0 %v1632
      %1831 = vmatmul.mubr.bf16.gmra.mxu0 %v1631
      %v1832 = vpop.f32.mrf.mxu0
      %v1833 = vadd.f32 %v1684, %v1832
      %v1834 = vpop.f32.mrf.mxu0
      %v1835 = vpop.f32.mrf.mxu0
      %v1836 = vadd.f32 %v1684, %v1835
      %v1837 = vpop.f32.mrf.mxu0
      %1838 = vmatprep.mubr.bf16.mxu0 %v1634
      %1839 = vmatmul.mubr.bf16.gmra.mxu0 %v1633
      %v1840 = vpop.f32.mrf.mxu0
      %v1841 = vadd.f32 %v1684, %v1840
      %v1842 = vpop.f32.mrf.mxu0
      %v1843 = vpop.f32.mrf.mxu0
      %v1844 = vadd.f32 %v1684, %v1843
      %v1845 = vpop.f32.mrf.mxu0
      %1846 = vmatprep.mubr.bf16.mxu0 %v1636
      %1847 = vmatmul.mubr.bf16.gmra.mxu0 %v1635
      %v1848 = vpop.f32.mrf.mxu0
      %v1849 = vadd.f32 %v1684, %v1848
      %v1850 = vpop.f32.mrf.mxu0
      %v1851 = vpop.f32.mrf.mxu0
      %v1852 = vadd.f32 %v1684, %v1851
      %v1853 = vpop.f32.mrf.mxu0
      %1854 = vmatprep.mubr.bf16.mxu0 %v1638
      %1855 = vmatmul.mubr.bf16.gmra.mxu0 %v1637
      %v1856 = vpop.f32.mrf.mxu0
      %v1857 = vadd.f32 %v1684, %v1856
      %v1858 = vpop.f32.mrf.mxu0
      %v1859 = vpop.f32.mrf.mxu0
      %v1860 = vadd.f32 %v1684, %v1859
      %v1861 = vpop.f32.mrf.mxu0
      %1862 = vmatprep.mubr.bf16.mxu0 %v1640
      %1863 = vmatmul.mubr.bf16.gmra.mxu0 %v1639
      %v1864 = vpop.f32.mrf.mxu0
      %v1865 = vadd.f32 %v1684, %v1864
      %v1866 = vpop.f32.mrf.mxu0
      %v1867 = vpop.f32.mrf.mxu0
      %v1868 = vadd.f32 %v1684, %v1867
      %v1869 = vpop.f32.mrf.mxu0
      %1870 = vmatprep.mubr.bf16.mxu0 %v1642
      %1871 = vmatmul.mubr.bf16.gmra.mxu0 %v1641
      %v1872 = vpop.f32.mrf.mxu0
      %v1873 = vadd.f32 %v1684, %v1872
      %v1874 = vpop.f32.mrf.mxu0
      %v1875 = vpop.f32.mrf.mxu0
      %v1876 = vadd.f32 %v1684, %v1875
      %v1877 = vpop.f32.mrf.mxu0
      %1878 = vmatprep.mubr.bf16.mxu0 %v1644
      %1879 = vmatmul.mubr.bf16.gmra.mxu0 %v1643
      %v1880 = vpop.f32.mrf.mxu0
      %v1881 = vadd.f32 %v1684, %v1880
      %v1882 = vpop.f32.mrf.mxu0
      %v1883 = vpop.f32.mrf.mxu0
      %v1884 = vadd.f32 %v1684, %v1883
      %v1885 = vpop.f32.mrf.mxu0
      %1886 = vmatprep.mubr.bf16.mxu0 %v1646
      %1887 = vmatmul.mubr.bf16.gmra.mxu0 %v1645
      %v1888 = vpop.f32.mrf.mxu0
      %v1889 = vadd.f32 %v1684, %v1888
      %v1890 = vpop.f32.mrf.mxu0
      %v1891 = vpop.f32.mrf.mxu0
      %v1892 = vpop.f32.mrf.mxu0
      %1893 = vdwg.mxu0
      %v1894 = vmax.f32 %v1817, 0.0
      %v1895 = vmax.f32 %v1820, 0.0
      %v1896 = vmax.f32 %v1825, 0.0
      %v1897 = vmax.f32 %v1828, 0.0
      %v1898 = vmax.f32 %v1833, 0.0
      %v1899 = vmax.f32 %v1836, 0.0
      %v1900 = vmax.f32 %v1841, 0.0
      %v1901 = vmax.f32 %v1844, 0.0
      %v1902 = vmax.f32 %v1849, 0.0
      %v1903 = vmax.f32 %v1852, 0.0
      %v1904 = vmax.f32 %v1857, 0.0
      %v1905 = vmax.f32 %v1860, 0.0
      %v1906 = vmax.f32 %v1865, 0.0
      %v1907 = vmax.f32 %v1868, 0.0
      %v1908 = vmax.f32 %v1873, 0.0
      %v1909 = vmax.f32 %v1876, 0.0
      %v1910 = vmax.f32 %v1881, 0.0
      %v1911 = vmax.f32 %v1884, 0.0
      %v1912 = vmax.f32 %v1889, 0.0
      %v1913 = vpack.c.bf16 %v1895, %v1894
      %v1914 = vpack.c.bf16 %v1897, %v1896
      %v1915 = vpack.c.bf16 %v1899, %v1898
      %v1916 = vpack.c.bf16 %v1901, %v1900
      %v1917 = vpack.c.bf16 %v1903, %v1902
      %v1918 = vpack.c.bf16 %v1905, %v1904
      %v1919 = vpack.c.bf16 %v1907, %v1906
      %v1920 = vpack.c.bf16 %v1909, %v1908
      %v1921 = vpack.c.bf16 %v1911, %v1910
      %v1922 = vpack.c.bf16 %v1912, %v1912
      %v1923 = vld [vmem:[%s7] sm:$0xf]
      %v1924 = vld [vmem:[%s7 + $0x4] sm:$0xf]
      %v1925 = vld [vmem:[%s7 + $0x8] sm:$0xf]
      %v1926 = vld [vmem:[%s7 + $0xc] sm:$0xf]
      %v1927 = vld [vmem:[%s7 + $0x10] sm:$0xf]
      %v1928 = vld [vmem:[%s7 + $0x14] sm:$0xf]
      %v1929 = vld [vmem:[%s7 + $0x18] sm:$0xf]
      %v1930 = vld [vmem:[%s7 + $0x1c] sm:$0xf]
      %v1931 = vld [vmem:[%s7 + $0x20] sm:$0xf]
      %v1932 = vld [vmem:[%s7 + $0x24] sm:$0xf]
      %v1933 = vld [vmem:[%s7 + $0x28] sm:$0xf]
      %v1934 = vld [vmem:[%s7 + $0x2c] sm:$0xf]
      %v1935 = vld [vmem:[%s7 + $0x30] sm:$0xf]
      %v1936 = vld [vmem:[%s7 + $0x34] sm:$0xf]
      %v1937 = vld [vmem:[%s7 + $0x38] sm:$0xf]
      %v1938 = vld [vmem:[%s7 + $0x3c] sm:$0xf]
      %v1939 = vld [vmem:[%s8] sm:$0x1]
      %v1941 = vlaneseq
      %v1942 = vshrl.u32 %v1941, 7
      %v1943 = vsub.s32 0, %v1942
      %v1944 = vrot.slane %v1939, %v1943
      %v1962 = vunpack.c.l.b16 %v1923
      %v1963 = vunpack.c.l.b16 %v1924
      %v1964 = vunpack.c.l.b16 %v1925
      %v1965 = vunpack.c.l.b16 %v1926
      %v1966 = vunpack.c.l.b16 %v1927
      %v1967 = vunpack.c.l.b16 %v1928
      %v1968 = vunpack.c.l.b16 %v1929
      %v1969 = vunpack.c.l.b16 %v1930
      %v1970 = vunpack.c.l.b16 %v1931
      %v1971 = vunpack.c.l.b16 %v1932
      %v1972 = vunpack.c.l.b16 %v1933
      %v1973 = vunpack.c.l.b16 %v1934
      %v1974 = vunpack.c.l.b16 %v1935
      %v1975 = vunpack.c.l.b16 %v1936
      %v1976 = vunpack.c.l.b16 %v1937
      %v1977 = vunpack.c.l.b16 %v1938
      %v1978 = vpack.c.b16 %v1963, %v1962
      %v1979 = vpack.c.b16 %v1965, %v1964
      %v1980 = vpack.c.b16 %v1967, %v1966
      %v1981 = vpack.c.b16 %v1969, %v1968
      %v1982 = vpack.c.b16 %v1971, %v1970
      %v1983 = vpack.c.b16 %v1973, %v1972
      %v1984 = vpack.c.b16 %v1975, %v1974
      %v1985 = vpack.c.b16 %v1977, %v1976
      %1994 = vmatprep.subr.bf16.mxu0 0
      %1995 = vmatpush1.bf16.msra.mxu0 %v1985
      %1996 = vmatprep.subr.bf16.mxu0 0
      %1997 = vmatpush1.bf16.msra.mxu0 %v1984
      %1998 = vmatprep.subr.bf16.mxu0 0
      %1999 = vmatpush1.bf16.msra.mxu0 %v1983
      %2000 = vmatprep.subr.bf16.mxu0 0
      %2001 = vmatpush1.bf16.msra.mxu0 %v1982
      %2002 = vmatprep.subr.bf16.mxu0 0
      %2003 = vmatpush1.bf16.msra.mxu0 %v1981
      %2004 = vmatprep.subr.bf16.mxu0 0
      %2005 = vmatpush1.bf16.msra.mxu0 %v1980
      %2006 = vmatprep.subr.bf16.mxu0 0
      %2007 = vmatpush1.bf16.msra.mxu0 %v1979
      %2008 = vmatprep.subr.bf16.mxu0 0
      %2009 = vmatpush1.bf16.msra.mxu0 %v1978
      %2010 = vmatprep.subr.bf16.mxu0 0
      %2011 = vmatpush2.bf16.msra.mxu0 0
      %2012 = vmatprep.subr.bf16.mxu0 0
      %2013 = vmatpush2.bf16.msra.mxu0 0
      %2014 = vmatprep.subr.bf16.mxu0 0
      %2015 = vmatpush2.bf16.msra.mxu0 0
      %2016 = vmatprep.subr.bf16.mxu0 0
      %2017 = vmatpush2.bf16.msra.mxu0 0
      %2018 = vmatprep.subr.bf16.mxu0 0
      %2019 = vmatpush2.bf16.msra.mxu0 0
      %2020 = vmatprep.subr.bf16.mxu0 0
      %2021 = vmatpush2.bf16.msra.mxu0 0
      %2022 = vmatprep.subr.bf16.mxu0 0
      %2023 = vmatpush2.bf16.msra.mxu0 0
      %2024 = vmatprep.subr.bf16.mxu0 0
      %2025 = vmatpush2.bf16.msra.mxu0 0
      %2026 = vmatprep.mubr.bf16.mxu0 0
      %2027 = vmatmul.mubr.bf16.gmra.mxu0 %v1913
      %v2028 = vpop.f32.mrf.mxu0
      %v2029 = vadd.f32 %v1944, %v2028
      %v2030 = vpop.f32.mrf.mxu0
      %v2031 = vpop.f32.mrf.mxu0
      %v2032 = vadd.f32 %v1944, %v2031
      %v2033 = vpop.f32.mrf.mxu0
      %2034 = vmatprep.mubr.bf16.mxu0 0
      %2035 = vmatmul.mubr.bf16.gmra.mxu0 %v1914
      %v2036 = vpop.f32.mrf.mxu0
      %v2037 = vadd.f32 %v1944, %v2036
      %v2038 = vpop.f32.mrf.mxu0
      %v2039 = vpop.f32.mrf.mxu0
      %v2040 = vadd.f32 %v1944, %v2039
      %v2041 = vpop.f32.mrf.mxu0
      %2042 = vmatprep.mubr.bf16.mxu0 0
      %2043 = vmatmul.mubr.bf16.gmra.mxu0 %v1915
      %v2044 = vpop.f32.mrf.mxu0
      %v2045 = vadd.f32 %v1944, %v2044
      %v2046 = vpop.f32.mrf.mxu0
      %v2047 = vpop.f32.mrf.mxu0
      %v2048 = vadd.f32 %v1944, %v2047
      %v2049 = vpop.f32.mrf.mxu0
      %2050 = vmatprep.mubr.bf16.mxu0 0
      %2051 = vmatmul.mubr.bf16.gmra.mxu0 %v1916
      %v2052 = vpop.f32.mrf.mxu0
      %v2053 = vadd.f32 %v1944, %v2052
      %v2054 = vpop.f32.mrf.mxu0
      %v2055 = vpop.f32.mrf.mxu0
      %v2056 = vadd.f32 %v1944, %v2055
      %v2057 = vpop.f32.mrf.mxu0
      %2058 = vmatprep.mubr.bf16.mxu0 0
      %2059 = vmatmul.mubr.bf16.gmra.mxu0 %v1917
      %v2060 = vpop.f32.mrf.mxu0
      %v2061 = vadd.f32 %v1944, %v2060
      %v2062 = vpop.f32.mrf.mxu0
      %v2063 = vpop.f32.mrf.mxu0
      %v2064 = vadd.f32 %v1944, %v2063
      %v2065 = vpop.f32.mrf.mxu0
      %2066 = vmatprep.mubr.bf16.mxu0 0
      %2067 = vmatmul.mubr.bf16.gmra.mxu0 %v1918
      %v2068 = vpop.f32.mrf.mxu0
      %v2069 = vadd.f32 %v1944, %v2068
      %v2070 = vpop.f32.mrf.mxu0
      %v2071 = vpop.f32.mrf.mxu0
      %v2072 = vadd.f32 %v1944, %v2071
      %v2073 = vpop.f32.mrf.mxu0
      %2074 = vmatprep.mubr.bf16.mxu0 0
      %2075 = vmatmul.mubr.bf16.gmra.mxu0 %v1919
      %v2076 = vpop.f32.mrf.mxu0
      %v2077 = vadd.f32 %v1944, %v2076
      %v2078 = vpop.f32.mrf.mxu0
      %v2079 = vpop.f32.mrf.mxu0
      %v2080 = vadd.f32 %v1944, %v2079
      %v2081 = vpop.f32.mrf.mxu0
      %2082 = vmatprep.mubr.bf16.mxu0 0
      %2083 = vmatmul.mubr.bf16.gmra.mxu0 %v1920
      %v2084 = vpop.f32.mrf.mxu0
      %v2085 = vadd.f32 %v1944, %v2084
      %v2086 = vpop.f32.mrf.mxu0
      %v2087 = vpop.f32.mrf.mxu0
      %v2088 = vadd.f32 %v1944, %v2087
      %v2089 = vpop.f32.mrf.mxu0
      %2090 = vmatprep.mubr.bf16.mxu0 0
      %2091 = vmatmul.mubr.bf16.gmra.mxu0 %v1921
      %v2092 = vpop.f32.mrf.mxu0
      %v2093 = vadd.f32 %v1944, %v2092
      %v2094 = vpop.f32.mrf.mxu0
      %v2095 = vpop.f32.mrf.mxu0
      %v2096 = vadd.f32 %v1944, %v2095
      %v2097 = vpop.f32.mrf.mxu0
      %2098 = vmatprep.mubr.bf16.mxu0 0
      %2099 = vmatmul.mubr.bf16.gmra.mxu0 %v1922
      %v2100 = vpop.f32.mrf.mxu0
      %v2101 = vadd.f32 %v1944, %v2100
      %v2102 = vpop.f32.mrf.mxu0
      %v2103 = vpop.f32.mrf.mxu0
      %v2104 = vpop.f32.mrf.mxu0
      %2105 = vdwg.mxu0
      %vm2106 = vcmask 72704
      %2107 = vst.msk [vmem:[%s334] sm:$0xff] %vm2106, %v2029
      %2108 = vst.msk [vmem:[%s334 + $0x8] sm:$0xff] %vm2106, %v2032
      %2109 = vst.msk [vmem:[%s334 + $0x10] sm:$0xff] %vm2106, %v2037
      %2110 = vst.msk [vmem:[%s334 + $0x18] sm:$0xff] %vm2106, %v2040
      %2111 = vst.msk [vmem:[%s334 + $0x20] sm:$0xff] %vm2106, %v2045
      %2112 = vst.msk [vmem:[%s334 + $0x28] sm:$0xff] %vm2106, %v2048
      %2113 = vst.msk [vmem:[%s334 + $0x30] sm:$0xff] %vm2106, %v2053
      %2114 = vst.msk [vmem:[%s334 + $0x38] sm:$0xff] %vm2106, %v2056
      %2115 = vst.msk [vmem:[%s334 + $0x40] sm:$0xff] %vm2106, %v2061
      %2116 = vst.msk [vmem:[%s334 + $0x48] sm:$0xff] %vm2106, %v2064
      %2117 = vst.msk [vmem:[%s334 + $0x50] sm:$0xff] %vm2106, %v2069
      %2118 = vst.msk [vmem:[%s334 + $0x58] sm:$0xff] %vm2106, %v2072
      %2119 = vst.msk [vmem:[%s334 + $0x60] sm:$0xff] %vm2106, %v2077
      %2120 = vst.msk [vmem:[%s334 + $0x68] sm:$0xff] %vm2106, %v2080
      %2121 = vst.msk [vmem:[%s334 + $0x70] sm:$0xff] %vm2106, %v2085
      %2122 = vst.msk [vmem:[%s334 + $0x78] sm:$0xff] %vm2106, %v2088
      %2123 = vst.msk [vmem:[%s334 + $0x80] sm:$0xff] %vm2106, %v2093
      %2124 = vst.msk [vmem:[%s334 + $0x88] sm:$0xff] %vm2106, %v2096
      %2125 = vst.msk [vmem:[%s334 + $0x90] sm:$0xff] %vm2106, %v2101
      %s2126 = smul.u32 19, %s20
      %p2127 = scmp.lt.s32.totalorder %s2126, 37
      %s2128 = scalar_select %p2127, %s2126, 37
      %s2129 = smul.addr %s2128, 8
      %s2130 = scalar_lea.vmem %s9, %s2129
      // Predicated region
      $region57: #{mlp_forward.1} parent=55 // pred_check
        %p2131 = pneg %p232
      $region58: #{mlp_forward.1} parent=55 // pred_check_branch
        %2133 = sbr.rel (%p2131) target = $region60
      $region59: #{mlp_forward.1} parent=55 // pred_region
        %s2134 = smul.u32 19, %s20
      $region60: #{mlp_forward.1} parent=55 // pred_fallthru
        _
    $region56: #{mlp_forward.1} parent=5 // pred_fallthru
      _
    %p2135 = scmp.le.s32.totalorder 2, %s15
    // Predicated region
    $region61: #{mlp_forward.1} parent=5 // pred_check
      %p2136 = pneg %p2135
    $region62: #{mlp_forward.1} parent=5 // pred_check_branch
      %2138 = sbr.rel (%p2136) target = $region64
    $region63: #{mlp_forward.1} parent=5 // pred_region
      %s2139 = ssub.s32 %s15, 2
      // Predicated region
      $region65: #{mlp_forward.1} parent=63 // pred_check
        %p2140 = pneg %p238
      $region66: #{mlp_forward.1} parent=63 // pred_check_branch
        %2142 = sbr.rel (%p2140) target = $region68
      $region67: #{mlp_forward.1} parent=63 // pred_region
        %s2143 = smul.u32 19, %s21
        %p2144 = scmp.lt.s32.totalorder %s2143, 37
        %s2145 = scalar_select %p2144, %s2143, 37
        %s2146 = smul.addr %s2145, 8
        %s2147 = scalar_lea.vmem %s9, %s2146
      $region68: #{mlp_forward.1} parent=63 // pred_fallthru
        _
    $region64: #{mlp_forward.1} parent=5 // pred_fallthru
      _
  $region6: #{mlp_forward.1} parent=0 // loop_footer
    %s19 = sadd.s32 1, %s15
  $region7: #{mlp_forward.1} parent=0 // loop_footer_branch
    %14 = sbr.rel target = $region3
  $region8: #{mlp_forward.1} parent=0 // loop_exit
    _

</llo_original>
